<compile_context>
chip_gen: v6e
topology: v6e:2x2x1
jax: 0.10.0
libtpu: 0.0.40
codegen_flags: <defaults>
</compile_context>

<pallas_src>
import jax
import jax.numpy as jnp
import numpy as np
from jax import lax
from jax.experimental import pallas as pl
from jax.experimental.pallas import tpu as pltpu

K = 7
PAD = K // 2


def _round_up(v, m):
    return -(-v // m) * m


def _vmem_capacity_bytes():
    try:
        return int(pltpu.get_tpu_info().vmem_capacity_bytes)
    except Exception:
        return 64 << 20  # conservative fallback (v7x per-TensorCore)


def _prefer_multi_step():
    # Best-effort: on 2-TensorCore-per-device chips (v7x class), prefer >= 2 grid
    # steps so the "parallel" batch-tile axis can shard across both cores.
    try:
        kind = jax.devices()[0].device_kind.lower()
    except Exception:
        return False
    return "7" in kind


def _plan(B, C, H, W, itemsize, x_budget_bytes, prefer_multi_step):
    """Pick (G images / step, C chunk size, pack_out flag)."""
    HW = H * W
    lanes = _round_up(HW, 128)

    def blk(g, cc):  # lane/sublane-padded VMEM bytes of one x block
        return g * _round_up(cc, 8) * lanes * itemsize

    per_buf = max(1, x_budget_bytes // 2)  # x block is double-buffered by the pipeline
    pack_out = W < 128
    g_pack = max(1, -(-128 // W)) if pack_out else 1

    # Chunk the channel axis (multiple-of-8 divisor of C) if full-C blocks would
    # force G below the lane-packing target.
    cc = C
    if C > 8 and blk(g_pack, C) > per_buf:
        best = None
        for cand in range(8, C, 8):
            if C % cand == 0 and blk(g_pack, cand) <= per_buf:
                best = cand  # keep the largest fitting divisor
        if best is not None:
            cc = best

    g_max = max(1, per_buf // blk(1, cc))
    g_cap = min(16, max(g_pack, 8))       # bound Python-unrolled packing loops
    g = max(1, min(B, g_max, g_cap))
    if prefer_multi_step and B >= 2:
        g = min(g, max(1, B // 2))        # keep >= 2 grid steps (both TCs busy)
    return g, cc, pack_out


def _make_kernel(G, H, W, pack_out):
    slot = W + 2 * PAD
    Hp = H + 2 * PAD
    Wp = G * slot
    Wv = Wp - 2 * PAD

    def kernel(w_ref, x_ref, o_ref, sum_sc, max_sc, avg_pad, max_pad):
        # w_ref   : SMEM (2*K*K,) f32 ; avg-channel taps have 1/C folded in.
        # x_ref   : VMEM (G, CC, H*W) lane-dense channel chunk, original dtype.
        # o_ref   : VMEM (H, G*W) packed  OR  (G, H, W) when W >= 128.
        # sum_sc  : VMEM (G, H*W) f32 running channel sum.
        # max_sc  : VMEM (G, H*W) f32 running channel max.
        # avg_pad : VMEM (Hp, Wp) packed zero-haloed pooled maps.
        # max_pad : VMEM (Hp, Wp)
        c = pl.program_id(1)
        CC = x_ref.shape[1]

        @pl.when(c == 0)
        def _():
            sum_sc[...] = jnp.zeros_like(sum_sc)
            max_sc[...] = jnp.full_like(max_sc, -jnp.inf)

        # --- single fused pass over the channel chunk ------------------------
        s_acc = sum_sc[...]
        m_acc = max_sc[...]
        for ci in range(CC):
            xc = x_ref[:, ci, :].astype(jnp.float32)   # (G, H*W)
            s_acc = s_acc + xc
            m_acc = jnp.maximum(m_acc, xc)
        sum_sc[...] = s_acc
        max_sc[...] = m_acc

        @pl.when(c == pl.num_programs(1) - 1)
        def _():
            s = sum_sc[...].reshape(G, H, W)   # 1/C already folded into the weights
            m = max_sc[...].reshape(G, H, W)

            # Build packed, zero-haloed pooled maps as values; ONE wide store each.
            zc = jnp.zeros((H, PAD), jnp.float32)
            zr = jnp.zeros((PAD, Wp), jnp.float32)
            a_cols, m_cols = [], []
            for g in range(G):
                a_cols += [zc, s[g], zc]
                m_cols += [zc, m[g], zc]
            a_int = a_cols[1] if G == 1 and PAD == 0 else jnp.concatenate(a_cols, axis=1)
            m_int = m_cols[1] if G == 1 and PAD == 0 else jnp.concatenate(m_cols, axis=1)
            avg_pad[...] = jnp.concatenate([zr, a_int, zr], axis=0)
            max_pad[...] = jnp.concatenate([zr, m_int, zr], axis=0)

            # 7x7 conv over the 2 pooled channels.  kw (lane) shifts are hoisted:
            # one lane-shifted column view per (map, kw); the 49 kh taps are cheap
            # sublane slices + VPU FMAs.
            # TODO(synk): if a bundle dump shows XLU binding before VALU here, stage
            # the 7 shifted views in VMEM scratch and re-read kh taps as plain vlds.
            acc = jnp.zeros((H, Wv), jnp.float32)
            for kw in range(K):
                a_col = avg_pad[:, kw:kw + Wv]          # (Hp, Wv)
                m_col = max_pad[:, kw:kw + Wv]
                for kh in range(K):
                    wa = w_ref[kh * K + kw]             # avg tap (pre-scaled by 1/C)
                    wm = w_ref[K * K + kh * K + kw]     # max tap
                    acc = acc + wa * a_col[kh:kh + H, :] + wm * m_col[kh:kh + H, :]

            outs = [acc[:, g * slot:g * slot + W] for g in range(G)]
            if pack_out:
                packed = outs[0] if G == 1 else jnp.concatenate(outs, axis=1)
                o_ref[...] = jax.nn.sigmoid(packed).astype(o_ref.dtype)      # (H, G*W)
            else:
                o_ref[...] = jax.nn.sigmoid(jnp.stack(outs, axis=0)).astype(o_ref.dtype)

    return kernel


def spatial_attention(x, w):
    """x: (B, C, H, W) any float dtype, w: (1, 2, K, K) -> (B, 1, H, W) f32."""
    B, C, H, W = x.shape
    HW = H * W
    itemsize = jnp.dtype(x.dtype).itemsize

    # ---- generation-aware VMEM budgeting --------------------------------------
    vmem_cap = _vmem_capacity_bytes()
    limit_ceiling = (vmem_cap * 3) // 4                       # leave headroom
    x_budget = max(8 << 20, min(24 << 20, limit_ceiling // 3))  # double-buffered x

    G, CC, pack_out = _plan(B, C, H, W, itemsize, x_budget, _prefer_multi_step())
    steps = -(-B // G)
    Bp = steps * G
    n_c = C // CC

    # ---- host-side layout prep (metadata reshape; x keeps its dtype) ----------
    xr = x.reshape(B, C, HW)
    if Bp != B:
        xr = jnp.pad(xr, ((0, Bp - B), (0, 0), (0, 0)))       # ragged batch -> pad

    slot = W + 2 * PAD
    Hp, Wp = H + 2 * PAD, G * slot

    # Fold mean's 1/C into the avg-channel weights (mathematically identical).
    w_avg = (w[0, 0].astype(jnp.float32) / jnp.float32(C)).reshape(-1)
    w_max = w[0, 1].astype(jnp.float32).reshape(-1)
    w_flat = jnp.concatenate([w_avg, w_max])                  # (2*K*K,)

    # ---- VMEM accounting with lane/sublane padding -----------------------------
    lanes_hw = _round_up(HW, 128)
    x_block = G * _round_up(CC, 8) * lanes_hw * itemsize
    if pack_out:
        out_block = _round_up(H, 8) * _round_up(G * W, 128) * 4
        out_shape = jax.ShapeDtypeStruct((steps, H, G * W), jnp.float32)
        out_spec = pl.BlockSpec((pl.Squeezed(), H, G * W), lambda s, c: (s, 0, 0))
    else:
        out_block = G * _round_up(H, 8) * _round_up(W, 128) * 4
        out_shape = jax.ShapeDtypeStruct((Bp, H, W), jnp.float32)
        out_spec = pl.BlockSpec((G, H, W), lambda s, c: (s, 0, 0))
    scratch_bytes = (2 * _round_up(G, 8) * lanes_hw
                     + 2 * _round_up(Hp, 8) * _round_up(Wp, 128)) * 4
    needed = 2 * (x_block + out_block) + scratch_bytes + (2 << 20)
    vmem_limit = int(min(limit_ceiling, max(32 << 20, needed)))

    kernel = _make_kernel(G, H, W, pack_out)

    out_raw = pl.pallas_call(
        kernel,
        out_shape=out_shape,
        grid_spec=pltpu.PrefetchScalarGridSpec(
            num_scalar_prefetch=0,
            grid=(steps, n_c),
            in_specs=[
                # small conv weights live in SMEM (scalar reads in the tap loop)
                pl.BlockSpec(memory_space=pltpu.MemorySpace.SMEM),
                # lane-dense x chunk: G images x CC channels x (H*W) lanes
                pl.BlockSpec((G, CC, HW), lambda s, c: (s, c, 0)),
            ],
            out_specs=out_spec,
            scratch_shapes=[
                pltpu.VMEM((G, HW), jnp.float32),   # running channel sum
                pltpu.VMEM((G, HW), jnp.float32),   # running channel max
                pltpu.VMEM((Hp, Wp), jnp.float32),  # packed padded avg map
                pltpu.VMEM((Hp, Wp), jnp.float32),  # packed padded max map
            ],
        ),
        compiler_params=pltpu.CompilerParams(
            dimension_semantics=("parallel", "arbitrary"),
            vmem_limit_bytes=vmem_limit),
    )(w_flat, xr)

    if pack_out:
        out = out_raw.reshape(steps, H, G, W).transpose(0, 2, 1, 3).reshape(Bp, 1, H, W)
    else:
        out = out_raw.reshape(Bp, 1, H, W)
    if Bp != B:
        out = out[:B]
    return out


def spatial_attention_ref(x, w):
    xf = x.astype(jnp.float32)
    avg = jnp.mean(xf, axis=1, keepdims=True)
    mx = jnp.max(xf, axis=1, keepdims=True)
    cat = jnp.concatenate([avg, mx], axis=1)
    out = lax.conv_general_dilated(
        cat, w.astype(jnp.float32), window_strides=(1, 1),
        padding=[(PAD, PAD), (PAD, PAD)],
        dimension_numbers=("NCHW", "OIHW", "NCHW"))
    return jax.nn.sigmoid(out)


if __name__ == "__main__":
    B, C, H, W = 2, 4, 16, 16
    key = jax.random.PRNGKey(0)
    kx, kw = jax.random.split(key)

    x = jax.random.normal(kx, (B, C, H, W), dtype=jnp.float32)

    # deterministic Conv2d(2, 1, 7, bias=False) weight init (kaiming-uniform bound)
    fan_in = 2 * K * K
    bound = 1.0 / np.sqrt(fan_in)
    w = jax.random.uniform(kw, (1, 2, K, K), minval=-bound, maxval=bound,
                           dtype=jnp.float32)

    out = spatial_attention(x, w)
    out = jax.block_until_ready(out)

    ref = spatial_attention_ref(x, w)
    assert out.shape == (B, 1, H, W), out.shape
    np.testing.assert_allclose(np.asarray(out), np.asarray(ref), atol=1e-5, rtol=1e-5)

    print("KERNEL_OK")
</pallas_src>

<mosaic_0001>
module attributes {stable_mosaic.version = 11 : i64} {
  func.func @kernel(%arg0: i32, %arg1: i32, %arg2: memref<98xf32, #tpu.memory_space<smem>>, %arg3: memref<2x4x256xf32, #tpu.memory_space<vmem>>, %arg4: memref<1x16x32xf32, #tpu.memory_space<vmem>>, %arg5: memref<2x256xf32, #tpu.memory_space<vmem>>, %arg6: memref<2x256xf32, #tpu.memory_space<vmem>>, %arg7: memref<22x44xf32, #tpu.memory_space<vmem>>, %arg8: memref<22x44xf32, #tpu.memory_space<vmem>>) attributes {dimension_semantics = [#tpu.dimension_semantics<parallel>, #tpu.dimension_semantics<arbitrary>], iteration_bounds = array<i64: 1, 1>, scalar_prefetch = 0 : i64, scratch_operands = 4 : i64, tpu.core_type = #tpu.core_type<tc>, window_params = [{transform_indices = @transform_0, window_bounds = array<i64: 98>}, {transform_indices = @transform_1, window_bounds = array<i64: 2, 4, 256>}, {transform_indices = @transform_2, window_bounds = array<i64: 1, 16, 32>}]} {
    %c0_i32 = arith.constant 0 : i32
    %0 = arith.cmpi eq, %arg1, %c0_i32 : i32
    %1 = arith.extui %0 : i1 to i32
    %c0_i32_0 = arith.constant 0 : i32
    %2 = arith.cmpi ne, %1, %c0_i32_0 : i32
    scf.if %2 {
      %cst = arith.constant 0.000000e+00 : f32
      %26 = vector.broadcast %cst : f32 to vector<2x256xf32>
      %c0_19 = arith.constant 0 : index
      %c0_20 = arith.constant 0 : index
      %27 = vector.load %arg5[%c0_19, %c0_20] : memref<2x256xf32, #tpu.memory_space<vmem>>, vector<2x256xf32>
      tpu.vector_store %arg5[%c0_19, %c0_20], %26 {strides = array<i32>} : memref<2x256xf32, #tpu.memory_space<vmem>>, vector<2x256xf32>,
      %cst_21 = arith.constant 0xFF800000 : f32
      %28 = vector.broadcast %cst_21 : f32 to vector<2x256xf32>
      %c0_22 = arith.constant 0 : index
      %c0_23 = arith.constant 0 : index
      %29 = vector.load %arg6[%c0_22, %c0_23] : memref<2x256xf32, #tpu.memory_space<vmem>>, vector<2x256xf32>
      tpu.vector_store %arg6[%c0_22, %c0_23], %28 {strides = array<i32>} : memref<2x256xf32, #tpu.memory_space<vmem>>, vector<2x256xf32>,
    } else {
    }
    %c0 = arith.constant 0 : index
    %c0_1 = arith.constant 0 : index
    %3 = vector.load %arg5[%c0, %c0_1] : memref<2x256xf32, #tpu.memory_space<vmem>>, vector<2x256xf32>
    %c0_2 = arith.constant 0 : index
    %c0_3 = arith.constant 0 : index
    %4 = vector.load %arg6[%c0_2, %c0_3] : memref<2x256xf32, #tpu.memory_space<vmem>>, vector<2x256xf32>
    %c0_4 = arith.constant 0 : index
    %c0_5 = arith.constant 0 : index
    %c0_6 = arith.constant 0 : index
    %5 = vector.load %arg3[%c0_4, %c0_5, %c0_6] : memref<2x4x256xf32, #tpu.memory_space<vmem>>, vector<2x1x256xf32>
    %6 = vector.shape_cast %5 : vector<2x1x256xf32> to vector<2x256xf32>
    %7 = arith.addf %3, %6 : vector<2x256xf32>
    %8 = arith.maximumf %4, %6 : vector<2x256xf32>
    %c0_7 = arith.constant 0 : index
    %c1 = arith.constant 1 : index
    %c0_8 = arith.constant 0 : index
    %9 = vector.load %arg3[%c0_7, %c1, %c0_8] : memref<2x4x256xf32, #tpu.memory_space<vmem>>, vector<2x1x256xf32>
    %10 = vector.shape_cast %9 : vector<2x1x256xf32> to vector<2x256xf32>
    %11 = arith.addf %7, %10 : vector<2x256xf32>
    %12 = arith.maximumf %8, %10 : vector<2x256xf32>
    %c0_9 = arith.constant 0 : index
    %c2 = arith.constant 2 : index
    %c0_10 = arith.constant 0 : index
    %13 = vector.load %arg3[%c0_9, %c2, %c0_10] : memref<2x4x256xf32, #tpu.memory_space<vmem>>, vector<2x1x256xf32>
    %14 = vector.shape_cast %13 : vector<2x1x256xf32> to vector<2x256xf32>
    %15 = arith.addf %11, %14 : vector<2x256xf32>
    %16 = arith.maximumf %12, %14 : vector<2x256xf32>
    %c0_11 = arith.constant 0 : index
    %c3 = arith.constant 3 : index
    %c0_12 = arith.constant 0 : index
    %17 = vector.load %arg3[%c0_11, %c3, %c0_12] : memref<2x4x256xf32, #tpu.memory_space<vmem>>, vector<2x1x256xf32>
    %18 = vector.shape_cast %17 : vector<2x1x256xf32> to vector<2x256xf32>
    %19 = arith.addf %15, %18 : vector<2x256xf32>
    %20 = arith.maximumf %16, %18 : vector<2x256xf32>
    %c0_13 = arith.constant 0 : index
    %c0_14 = arith.constant 0 : index
    %21 = vector.load %arg5[%c0_13, %c0_14] : memref<2x256xf32, #tpu.memory_space<vmem>>, vector<2x256xf32>
    tpu.vector_store %arg5[%c0_13, %c0_14], %19 {strides = array<i32>} : memref<2x256xf32, #tpu.memory_space<vmem>>, vector<2x256xf32>,
    %c0_15 = arith.constant 0 : index
    %c0_16 = arith.constant 0 : index
    %22 = vector.load %arg6[%c0_15, %c0_16] : memref<2x256xf32, #tpu.memory_space<vmem>>, vector<2x256xf32>
    tpu.vector_store %arg6[%c0_15, %c0_16], %20 {strides = array<i32>} : memref<2x256xf32, #tpu.memory_space<vmem>>, vector<2x256xf32>,
    %c0_i32_17 = arith.constant 0 : i32
    %23 = arith.cmpi eq, %arg1, %c0_i32_17 : i32
    %24 = arith.extui %23 : i1 to i32
    %c0_i32_18 = arith.constant 0 : i32
    %25 = arith.cmpi ne, %24, %c0_i32_18 : i32
    scf.if %25 {
      %c0_19 = arith.constant 0 : index
      %c0_20 = arith.constant 0 : index
      %26 = vector.load %arg5[%c0_19, %c0_20] : memref<2x256xf32, #tpu.memory_space<vmem>>, vector<2x256xf32>
      %27 = vector.shape_cast %26 : vector<2x256xf32> to vector<2x16x16xf32>
      %c0_21 = arith.constant 0 : index
      %c0_22 = arith.constant 0 : index
      %28 = vector.load %arg6[%c0_21, %c0_22] : memref<2x256xf32, #tpu.memory_space<vmem>>, vector<2x256xf32>
      %29 = vector.shape_cast %28 : vector<2x256xf32> to vector<2x16x16xf32>
      %cst = arith.constant 0.000000e+00 : f32
      %30 = vector.broadcast %cst : f32 to vector<16x3xf32>
      %cst_23 = arith.constant 0.000000e+00 : f32
      %31 = vector.broadcast %cst_23 : f32 to vector<3x44xf32>
      %32 = vector.extract_strided_slice %27 {offsets = [0, 0, 0], sizes = [1, 16, 16], strides = [1, 1, 1]} : vector<2x16x16xf32> to vector<1x16x16xf32>
      %33 = vector.shape_cast %32 : vector<1x16x16xf32> to vector<16x16xf32>
      %34 = vector.extract_strided_slice %29 {offsets = [0, 0, 0], sizes = [1, 16, 16], strides = [1, 1, 1]} : vector<2x16x16xf32> to vector<1x16x16xf32>
      %35 = vector.shape_cast %34 : vector<1x16x16xf32> to vector<16x16xf32>
      %36 = vector.extract_strided_slice %27 {offsets = [1, 0, 0], sizes = [1, 16, 16], strides = [1, 1, 1]} : vector<2x16x16xf32> to vector<1x16x16xf32>
      %37 = vector.shape_cast %36 : vector<1x16x16xf32> to vector<16x16xf32>
      %38 = vector.extract_strided_slice %29 {offsets = [1, 0, 0], sizes = [1, 16, 16], strides = [1, 1, 1]} : vector<2x16x16xf32> to vector<1x16x16xf32>
      %39 = vector.shape_cast %38 : vector<1x16x16xf32> to vector<16x16xf32>
      %40 = tpu.concatenate %30, %33, %30, %30, %37, %30 in 1 : vector<16x3xf32>, vector<16x16xf32>, vector<16x3xf32>, vector<16x3xf32>, vector<16x16xf32>, vector<16x3xf32> -> vector<16x44xf32>
      %41 = tpu.concatenate %30, %35, %30, %30, %39, %30 in 1 : vector<16x3xf32>, vector<16x16xf32>, vector<16x3xf32>, vector<16x3xf32>, vector<16x16xf32>, vector<16x3xf32> -> vector<16x44xf32>
      %42 = tpu.concatenate %31, %40, %31 in 0 : vector<3x44xf32>, vector<16x44xf32>, vector<3x44xf32> -> vector<22x44xf32>
      %c0_24 = arith.constant 0 : index
      %c0_25 = arith.constant 0 : index
      %43 = vector.load %arg7[%c0_24, %c0_25] : memref<22x44xf32, #tpu.memory_space<vmem>>, vector<22x44xf32>
      tpu.vector_store %arg7[%c0_24, %c0_25], %42 {strides = array<i32>} : memref<22x44xf32, #tpu.memory_space<vmem>>, vector<22x44xf32>,
      %44 = tpu.concatenate %31, %41, %31 in 0 : vector<3x44xf32>, vector<16x44xf32>, vector<3x44xf32> -> vector<22x44xf32>
      %c0_26 = arith.constant 0 : index
      %c0_27 = arith.constant 0 : index
      %45 = vector.load %arg8[%c0_26, %c0_27] : memref<22x44xf32, #tpu.memory_space<vmem>>, vector<22x44xf32>
      tpu.vector_store %arg8[%c0_26, %c0_27], %44 {strides = array<i32>} : memref<22x44xf32, #tpu.memory_space<vmem>>, vector<22x44xf32>,
      %cst_28 = arith.constant 0.000000e+00 : f32
      %46 = vector.broadcast %cst_28 : f32 to vector<16x38xf32>
      %c0_29 = arith.constant 0 : index
      %c0_30 = arith.constant 0 : index
      %47 = vector.load %arg7[%c0_29, %c0_30] : memref<22x44xf32, #tpu.memory_space<vmem>>, vector<22x38xf32>
      %c0_31 = arith.constant 0 : index
      %c0_32 = arith.constant 0 : index
      %48 = vector.load %arg8[%c0_31, %c0_32] : memref<22x44xf32, #tpu.memory_space<vmem>>, vector<22x38xf32>
      %c0_33 = arith.constant 0 : index
      %49 = memref.load %arg2[%c0_33] : memref<98xf32, #tpu.memory_space<smem>>
      %c49 = arith.constant 49 : index
      %50 = memref.load %arg2[%c49] : memref<98xf32, #tpu.memory_space<smem>>
      %51 = vector.extract_strided_slice %47 {offsets = [0, 0], sizes = [16, 38], strides = [1, 1]} : vector<22x38xf32> to vector<16x38xf32>
      %52 = vector.broadcast %49 : f32 to vector<16x38xf32>
      %53 = arith.mulf %52, %51 : vector<16x38xf32>
      %54 = arith.addf %46, %53 : vector<16x38xf32>
      %55 = vector.extract_strided_slice %48 {offsets = [0, 0], sizes = [16, 38], strides = [1, 1]} : vector<22x38xf32> to vector<16x38xf32>
      %56 = vector.broadcast %50 : f32 to vector<16x38xf32>
      %57 = arith.mulf %56, %55 : vector<16x38xf32>
      %58 = arith.addf %54, %57 : vector<16x38xf32>
      %c7 = arith.constant 7 : index
      %59 = memref.load %arg2[%c7] : memref<98xf32, #tpu.memory_space<smem>>
      %c56 = arith.constant 56 : index
      %60 = memref.load %arg2[%c56] : memref<98xf32, #tpu.memory_space<smem>>
      %61 = vector.extract_strided_slice %47 {offsets = [1, 0], sizes = [16, 38], strides = [1, 1]} : vector<22x38xf32> to vector<16x38xf32>
      %62 = vector.broadcast %59 : f32 to vector<16x38xf32>
      %63 = arith.mulf %62, %61 : vector<16x38xf32>
      %64 = arith.addf %58, %63 : vector<16x38xf32>
      %65 = vector.extract_strided_slice %48 {offsets = [1, 0], sizes = [16, 38], strides = [1, 1]} : vector<22x38xf32> to vector<16x38xf32>
      %66 = vector.broadcast %60 : f32 to vector<16x38xf32>
      %67 = arith.mulf %66, %65 : vector<16x38xf32>
      %68 = arith.addf %64, %67 : vector<16x38xf32>
      %c14 = arith.constant 14 : index
      %69 = memref.load %arg2[%c14] : memref<98xf32, #tpu.memory_space<smem>>
      %c63 = arith.constant 63 : index
      %70 = memref.load %arg2[%c63] : memref<98xf32, #tpu.memory_space<smem>>
      %71 = vector.extract_strided_slice %47 {offsets = [2, 0], sizes = [16, 38], strides = [1, 1]} : vector<22x38xf32> to vector<16x38xf32>
      %72 = vector.broadcast %69 : f32 to vector<16x38xf32>
      %73 = arith.mulf %72, %71 : vector<16x38xf32>
      %74 = arith.addf %68, %73 : vector<16x38xf32>
      %75 = vector.extract_strided_slice %48 {offsets = [2, 0], sizes = [16, 38], strides = [1, 1]} : vector<22x38xf32> to vector<16x38xf32>
      %76 = vector.broadcast %70 : f32 to vector<16x38xf32>
      %77 = arith.mulf %76, %75 : vector<16x38xf32>
      %78 = arith.addf %74, %77 : vector<16x38xf32>
      %c21 = arith.constant 21 : index
      %79 = memref.load %arg2[%c21] : memref<98xf32, #tpu.memory_space<smem>>
      %c70 = arith.constant 70 : index
      %80 = memref.load %arg2[%c70] : memref<98xf32, #tpu.memory_space<smem>>
      %81 = vector.extract_strided_slice %47 {offsets = [3, 0], sizes = [16, 38], strides = [1, 1]} : vector<22x38xf32> to vector<16x38xf32>
      %82 = vector.broadcast %79 : f32 to vector<16x38xf32>
      %83 = arith.mulf %82, %81 : vector<16x38xf32>
      %84 = arith.addf %78, %83 : vector<16x38xf32>
      %85 = vector.extract_strided_slice %48 {offsets = [3, 0], sizes = [16, 38], strides = [1, 1]} : vector<22x38xf32> to vector<16x38xf32>
      %86 = vector.broadcast %80 : f32 to vector<16x38xf32>
      %87 = arith.mulf %86, %85 : vector<16x38xf32>
      %88 = arith.addf %84, %87 : vector<16x38xf32>
      %c28 = arith.constant 28 : index
      %89 = memref.load %arg2[%c28] : memref<98xf32, #tpu.memory_space<smem>>
      %c77 = arith.constant 77 : index
      %90 = memref.load %arg2[%c77] : memref<98xf32, #tpu.memory_space<smem>>
      %91 = vector.extract_strided_slice %47 {offsets = [4, 0], sizes = [16, 38], strides = [1, 1]} : vector<22x38xf32> to vector<16x38xf32>
      %92 = vector.broadcast %89 : f32 to vector<16x38xf32>
      %93 = arith.mulf %92, %91 : vector<16x38xf32>
      %94 = arith.addf %88, %93 : vector<16x38xf32>
      %95 = vector.extract_strided_slice %48 {offsets = [4, 0], sizes = [16, 38], strides = [1, 1]} : vector<22x38xf32> to vector<16x38xf32>
      %96 = vector.broadcast %90 : f32 to vector<16x38xf32>
      %97 = arith.mulf %96, %95 : vector<16x38xf32>
      %98 = arith.addf %94, %97 : vector<16x38xf32>
      %c35 = arith.constant 35 : index
      %99 = memref.load %arg2[%c35] : memref<98xf32, #tpu.memory_space<smem>>
      %c84 = arith.constant 84 : index
      %100 = memref.load %arg2[%c84] : memref<98xf32, #tpu.memory_space<smem>>
      %101 = vector.extract_strided_slice %47 {offsets = [5, 0], sizes = [16, 38], strides = [1, 1]} : vector<22x38xf32> to vector<16x38xf32>
      %102 = vector.broadcast %99 : f32 to vector<16x38xf32>
      %103 = arith.mulf %102, %101 : vector<16x38xf32>
      %104 = arith.addf %98, %103 : vector<16x38xf32>
      %105 = vector.extract_strided_slice %48 {offsets = [5, 0], sizes = [16, 38], strides = [1, 1]} : vector<22x38xf32> to vector<16x38xf32>
      %106 = vector.broadcast %100 : f32 to vector<16x38xf32>
      %107 = arith.mulf %106, %105 : vector<16x38xf32>
      %108 = arith.addf %104, %107 : vector<16x38xf32>
      %c42 = arith.constant 42 : index
      %109 = memref.load %arg2[%c42] : memref<98xf32, #tpu.memory_space<smem>>
      %c91 = arith.constant 91 : index
      %110 = memref.load %arg2[%c91] : memref<98xf32, #tpu.memory_space<smem>>
      %111 = vector.extract_strided_slice %47 {offsets = [6, 0], sizes = [16, 38], strides = [1, 1]} : vector<22x38xf32> to vector<16x38xf32>
      %112 = vector.broadcast %109 : f32 to vector<16x38xf32>
      %113 = arith.mulf %112, %111 : vector<16x38xf32>
      %114 = arith.addf %108, %113 : vector<16x38xf32>
      %115 = vector.extract_strided_slice %48 {offsets = [6, 0], sizes = [16, 38], strides = [1, 1]} : vector<22x38xf32> to vector<16x38xf32>
      %116 = vector.broadcast %110 : f32 to vector<16x38xf32>
      %117 = arith.mulf %116, %115 : vector<16x38xf32>
      %118 = arith.addf %114, %117 : vector<16x38xf32>
      %c0_34 = arith.constant 0 : index
      %c1_35 = arith.constant 1 : index
      %119 = vector.load %arg7[%c0_34, %c1_35] : memref<22x44xf32, #tpu.memory_space<vmem>>, vector<22x38xf32>
      %c0_36 = arith.constant 0 : index
      %c1_37 = arith.constant 1 : index
      %120 = vector.load %arg8[%c0_36, %c1_37] : memref<22x44xf32, #tpu.memory_space<vmem>>, vector<22x38xf32>
      %c1_38 = arith.constant 1 : index
      %121 = memref.load %arg2[%c1_38] : memref<98xf32, #tpu.memory_space<smem>>
      %c50 = arith.constant 50 : index
      %122 = memref.load %arg2[%c50] : memref<98xf32, #tpu.memory_space<smem>>
      %123 = vector.extract_strided_slice %119 {offsets = [0, 0], sizes = [16, 38], strides = [1, 1]} : vector<22x38xf32> to vector<16x38xf32>
      %124 = vector.broadcast %121 : f32 to vector<16x38xf32>
      %125 = arith.mulf %124, %123 : vector<16x38xf32>
      %126 = arith.addf %118, %125 : vector<16x38xf32>
      %127 = vector.extract_strided_slice %120 {offsets = [0, 0], sizes = [16, 38], strides = [1, 1]} : vector<22x38xf32> to vector<16x38xf32>
      %128 = vector.broadcast %122 : f32 to vector<16x38xf32>
      %129 = arith.mulf %128, %127 : vector<16x38xf32>
      %130 = arith.addf %126, %129 : vector<16x38xf32>
      %c8 = arith.constant 8 : index
      %131 = memref.load %arg2[%c8] : memref<98xf32, #tpu.memory_space<smem>>
      %c57 = arith.constant 57 : index
      %132 = memref.load %arg2[%c57] : memref<98xf32, #tpu.memory_space<smem>>
      %133 = vector.extract_strided_slice %119 {offsets = [1, 0], sizes = [16, 38], strides = [1, 1]} : vector<22x38xf32> to vector<16x38xf32>
      %134 = vector.broadcast %131 : f32 to vector<16x38xf32>
      %135 = arith.mulf %134, %133 : vector<16x38xf32>
      %136 = arith.addf %130, %135 : vector<16x38xf32>
      %137 = vector.extract_strided_slice %120 {offsets = [1, 0], sizes = [16, 38], strides = [1, 1]} : vector<22x38xf32> to vector<16x38xf32>
      %138 = vector.broadcast %132 : f32 to vector<16x38xf32>
      %139 = arith.mulf %138, %137 : vector<16x38xf32>
      %140 = arith.addf %136, %139 : vector<16x38xf32>
      %c15 = arith.constant 15 : index
      %141 = memref.load %arg2[%c15] : memref<98xf32, #tpu.memory_space<smem>>
      %c64 = arith.constant 64 : index
      %142 = memref.load %arg2[%c64] : memref<98xf32, #tpu.memory_space<smem>>
      %143 = vector.extract_strided_slice %119 {offsets = [2, 0], sizes = [16, 38], strides = [1, 1]} : vector<22x38xf32> to vector<16x38xf32>
      %144 = vector.broadcast %141 : f32 to vector<16x38xf32>
      %145 = arith.mulf %144, %143 : vector<16x38xf32>
      %146 = arith.addf %140, %145 : vector<16x38xf32>
      %147 = vector.extract_strided_slice %120 {offsets = [2, 0], sizes = [16, 38], strides = [1, 1]} : vector<22x38xf32> to vector<16x38xf32>
      %148 = vector.broadcast %142 : f32 to vector<16x38xf32>
      %149 = arith.mulf %148, %147 : vector<16x38xf32>
      %150 = arith.addf %146, %149 : vector<16x38xf32>
      %c22 = arith.constant 22 : index
      %151 = memref.load %arg2[%c22] : memref<98xf32, #tpu.memory_space<smem>>
      %c71 = arith.constant 71 : index
      %152 = memref.load %arg2[%c71] : memref<98xf32, #tpu.memory_space<smem>>
      %153 = vector.extract_strided_slice %119 {offsets = [3, 0], sizes = [16, 38], strides = [1, 1]} : vector<22x38xf32> to vector<16x38xf32>
      %154 = vector.broadcast %151 : f32 to vector<16x38xf32>
      %155 = arith.mulf %154, %153 : vector<16x38xf32>
      %156 = arith.addf %150, %155 : vector<16x38xf32>
      %157 = vector.extract_strided_slice %120 {offsets = [3, 0], sizes = [16, 38], strides = [1, 1]} : vector<22x38xf32> to vector<16x38xf32>
      %158 = vector.broadcast %152 : f32 to vector<16x38xf32>
      %159 = arith.mulf %158, %157 : vector<16x38xf32>
      %160 = arith.addf %156, %159 : vector<16x38xf32>
      %c29 = arith.constant 29 : index
      %161 = memref.load %arg2[%c29] : memref<98xf32, #tpu.memory_space<smem>>
      %c78 = arith.constant 78 : index
      %162 = memref.load %arg2[%c78] : memref<98xf32, #tpu.memory_space<smem>>
      %163 = vector.extract_strided_slice %119 {offsets = [4, 0], sizes = [16, 38], strides = [1, 1]} : vector<22x38xf32> to vector<16x38xf32>
      %164 = vector.broadcast %161 : f32 to vector<16x38xf32>
      %165 = arith.mulf %164, %163 : vector<16x38xf32>
      %166 = arith.addf %160, %165 : vector<16x38xf32>
      %167 = vector.extract_strided_slice %120 {offsets = [4, 0], sizes = [16, 38], strides = [1, 1]} : vector<22x38xf32> to vector<16x38xf32>
      %168 = vector.broadcast %162 : f32 to vector<16x38xf32>
      %169 = arith.mulf %168, %167 : vector<16x38xf32>
      %170 = arith.addf %166, %169 : vector<16x38xf32>
      %c36 = arith.constant 36 : index
      %171 = memref.load %arg2[%c36] : memref<98xf32, #tpu.memory_space<smem>>
      %c85 = arith.constant 85 : index
      %172 = memref.load %arg2[%c85] : memref<98xf32, #tpu.memory_space<smem>>
      %173 = vector.extract_strided_slice %119 {offsets = [5, 0], sizes = [16, 38], strides = [1, 1]} : vector<22x38xf32> to vector<16x38xf32>
      %174 = vector.broadcast %171 : f32 to vector<16x38xf32>
      %175 = arith.mulf %174, %173 : vector<16x38xf32>
      %176 = arith.addf %170, %175 : vector<16x38xf32>
      %177 = vector.extract_strided_slice %120 {offsets = [5, 0], sizes = [16, 38], strides = [1, 1]} : vector<22x38xf32> to vector<16x38xf32>
      %178 = vector.broadcast %172 : f32 to vector<16x38xf32>
      %179 = arith.mulf %178, %177 : vector<16x38xf32>
      %180 = arith.addf %176, %179 : vector<16x38xf32>
      %c43 = arith.constant 43 : index
      %181 = memref.load %arg2[%c43] : memref<98xf32, #tpu.memory_space<smem>>
      %c92 = arith.constant 92 : index
      %182 = memref.load %arg2[%c92] : memref<98xf32, #tpu.memory_space<smem>>
      %183 = vector.extract_strided_slice %119 {offsets = [6, 0], sizes = [16, 38], strides = [1, 1]} : vector<22x38xf32> to vector<16x38xf32>
      %184 = vector.broadcast %181 : f32 to vector<16x38xf32>
      %185 = arith.mulf %184, %183 : vector<16x38xf32>
      %186 = arith.addf %180, %185 : vector<16x38xf32>
      %187 = vector.extract_strided_slice %120 {offsets = [6, 0], sizes = [16, 38], strides = [1, 1]} : vector<22x38xf32> to vector<16x38xf32>
      %188 = vector.broadcast %182 : f32 to vector<16x38xf32>
      %189 = arith.mulf %188, %187 : vector<16x38xf32>
      %190 = arith.addf %186, %189 : vector<16x38xf32>
      %c0_39 = arith.constant 0 : index
      %c2_40 = arith.constant 2 : index
      %191 = vector.load %arg7[%c0_39, %c2_40] : memref<22x44xf32, #tpu.memory_space<vmem>>, vector<22x38xf32>
      %c0_41 = arith.constant 0 : index
      %c2_42 = arith.constant 2 : index
      %192 = vector.load %arg8[%c0_41, %c2_42] : memref<22x44xf32, #tpu.memory_space<vmem>>, vector<22x38xf32>
      %c2_43 = arith.constant 2 : index
      %193 = memref.load %arg2[%c2_43] : memref<98xf32, #tpu.memory_space<smem>>
      %c51 = arith.constant 51 : index
      %194 = memref.load %arg2[%c51] : memref<98xf32, #tpu.memory_space<smem>>
      %195 = vector.extract_strided_slice %191 {offsets = [0, 0], sizes = [16, 38], strides = [1, 1]} : vector<22x38xf32> to vector<16x38xf32>
      %196 = vector.broadcast %193 : f32 to vector<16x38xf32>
      %197 = arith.mulf %196, %195 : vector<16x38xf32>
      %198 = arith.addf %190, %197 : vector<16x38xf32>
      %199 = vector.extract_strided_slice %192 {offsets = [0, 0], sizes = [16, 38], strides = [1, 1]} : vector<22x38xf32> to vector<16x38xf32>
      %200 = vector.broadcast %194 : f32 to vector<16x38xf32>
      %201 = arith.mulf %200, %199 : vector<16x38xf32>
      %202 = arith.addf %198, %201 : vector<16x38xf32>
      %c9 = arith.constant 9 : index
      %203 = memref.load %arg2[%c9] : memref<98xf32, #tpu.memory_space<smem>>
      %c58 = arith.constant 58 : index
      %204 = memref.load %arg2[%c58] : memref<98xf32, #tpu.memory_space<smem>>
      %205 = vector.extract_strided_slice %191 {offsets = [1, 0], sizes = [16, 38], strides = [1, 1]} : vector<22x38xf32> to vector<16x38xf32>
      %206 = vector.broadcast %203 : f32 to vector<16x38xf32>
      %207 = arith.mulf %206, %205 : vector<16x38xf32>
      %208 = arith.addf %202, %207 : vector<16x38xf32>
      %209 = vector.extract_strided_slice %192 {offsets = [1, 0], sizes = [16, 38], strides = [1, 1]} : vector<22x38xf32> to vector<16x38xf32>
      %210 = vector.broadcast %204 : f32 to vector<16x38xf32>
      %211 = arith.mulf %210, %209 : vector<16x38xf32>
      %212 = arith.addf %208, %211 : vector<16x38xf32>
      %c16 = arith.constant 16 : index
      %213 = memref.load %arg2[%c16] : memref<98xf32, #tpu.memory_space<smem>>
      %c65 = arith.constant 65 : index
      %214 = memref.load %arg2[%c65] : memref<98xf32, #tpu.memory_space<smem>>
      %215 = vector.extract_strided_slice %191 {offsets = [2, 0], sizes = [16, 38], strides = [1, 1]} : vector<22x38xf32> to vector<16x38xf32>
      %216 = vector.broadcast %213 : f32 to vector<16x38xf32>
      %217 = arith.mulf %216, %215 : vector<16x38xf32>
      %218 = arith.addf %212, %217 : vector<16x38xf32>
      %219 = vector.extract_strided_slice %192 {offsets = [2, 0], sizes = [16, 38], strides = [1, 1]} : vector<22x38xf32> to vector<16x38xf32>
      %220 = vector.broadcast %214 : f32 to vector<16x38xf32>
      %221 = arith.mulf %220, %219 : vector<16x38xf32>
      %222 = arith.addf %218, %221 : vector<16x38xf32>
      %c23 = arith.constant 23 : index
      %223 = memref.load %arg2[%c23] : memref<98xf32, #tpu.memory_space<smem>>
      %c72 = arith.constant 72 : index
      %224 = memref.load %arg2[%c72] : memref<98xf32, #tpu.memory_space<smem>>
      %225 = vector.extract_strided_slice %191 {offsets = [3, 0], sizes = [16, 38], strides = [1, 1]} : vector<22x38xf32> to vector<16x38xf32>
      %226 = vector.broadcast %223 : f32 to vector<16x38xf32>
      %227 = arith.mulf %226, %225 : vector<16x38xf32>
      %228 = arith.addf %222, %227 : vector<16x38xf32>
      %229 = vector.extract_strided_slice %192 {offsets = [3, 0], sizes = [16, 38], strides = [1, 1]} : vector<22x38xf32> to vector<16x38xf32>
      %230 = vector.broadcast %224 : f32 to vector<16x38xf32>
      %231 = arith.mulf %230, %229 : vector<16x38xf32>
      %232 = arith.addf %228, %231 : vector<16x38xf32>
      %c30 = arith.constant 30 : index
      %233 = memref.load %arg2[%c30] : memref<98xf32, #tpu.memory_space<smem>>
      %c79 = arith.constant 79 : index
      %234 = memref.load %arg2[%c79] : memref<98xf32, #tpu.memory_space<smem>>
      %235 = vector.extract_strided_slice %191 {offsets = [4, 0], sizes = [16, 38], strides = [1, 1]} : vector<22x38xf32> to vector<16x38xf32>
      %236 = vector.broadcast %233 : f32 to vector<16x38xf32>
      %237 = arith.mulf %236, %235 : vector<16x38xf32>
      %238 = arith.addf %232, %237 : vector<16x38xf32>
      %239 = vector.extract_strided_slice %192 {offsets = [4, 0], sizes = [16, 38], strides = [1, 1]} : vector<22x38xf32> to vector<16x38xf32>
      %240 = vector.broadcast %234 : f32 to vector<16x38xf32>
      %241 = arith.mulf %240, %239 : vector<16x38xf32>
      %242 = arith.addf %238, %241 : vector<16x38xf32>
      %c37 = arith.constant 37 : index
      %243 = memref.load %arg2[%c37] : memref<98xf32, #tpu.memory_space<smem>>
      %c86 = arith.constant 86 : index
      %244 = memref.load %arg2[%c86] : memref<98xf32, #tpu.memory_space<smem>>
      %245 = vector.extract_strided_slice %191 {offsets = [5, 0], sizes = [16, 38], strides = [1, 1]} : vector<22x38xf32> to vector<16x38xf32>
      %246 = vector.broadcast %243 : f32 to vector<16x38xf32>
      %247 = arith.mulf %246, %245 : vector<16x38xf32>
      %248 = arith.addf %242, %247 : vector<16x38xf32>
      %249 = vector.extract_strided_slice %192 {offsets = [5, 0], sizes = [16, 38], strides = [1, 1]} : vector<22x38xf32> to vector<16x38xf32>
      %250 = vector.broadcast %244 : f32 to vector<16x38xf32>
      %251 = arith.mulf %250, %249 : vector<16x38xf32>
      %252 = arith.addf %248, %251 : vector<16x38xf32>
      %c44 = arith.constant 44 : index
      %253 = memref.load %arg2[%c44] : memref<98xf32, #tpu.memory_space<smem>>
      %c93 = arith.constant 93 : index
      %254 = memref.load %arg2[%c93] : memref<98xf32, #tpu.memory_space<smem>>
      %255 = vector.extract_strided_slice %191 {offsets = [6, 0], sizes = [16, 38], strides = [1, 1]} : vector<22x38xf32> to vector<16x38xf32>
      %256 = vector.broadcast %253 : f32 to vector<16x38xf32>
      %257 = arith.mulf %256, %255 : vector<16x38xf32>
      %258 = arith.addf %252, %257 : vector<16x38xf32>
      %259 = vector.extract_strided_slice %192 {offsets = [6, 0], sizes = [16, 38], strides = [1, 1]} : vector<22x38xf32> to vector<16x38xf32>
      %260 = vector.broadcast %254 : f32 to vector<16x38xf32>
      %261 = arith.mulf %260, %259 : vector<16x38xf32>
      %262 = arith.addf %258, %261 : vector<16x38xf32>
      %c0_44 = arith.constant 0 : index
      %c3_45 = arith.constant 3 : index
      %263 = vector.load %arg7[%c0_44, %c3_45] : memref<22x44xf32, #tpu.memory_space<vmem>>, vector<22x38xf32>
      %c0_46 = arith.constant 0 : index
      %c3_47 = arith.constant 3 : index
      %264 = vector.load %arg8[%c0_46, %c3_47] : memref<22x44xf32, #tpu.memory_space<vmem>>, vector<22x38xf32>
      %c3_48 = arith.constant 3 : index
      %265 = memref.load %arg2[%c3_48] : memref<98xf32, #tpu.memory_space<smem>>
      %c52 = arith.constant 52 : index
      %266 = memref.load %arg2[%c52] : memref<98xf32, #tpu.memory_space<smem>>
      %267 = vector.extract_strided_slice %263 {offsets = [0, 0], sizes = [16, 38], strides = [1, 1]} : vector<22x38xf32> to vector<16x38xf32>
      %268 = vector.broadcast %265 : f32 to vector<16x38xf32>
      %269 = arith.mulf %268, %267 : vector<16x38xf32>
      %270 = arith.addf %262, %269 : vector<16x38xf32>
      %271 = vector.extract_strided_slice %264 {offsets = [0, 0], sizes = [16, 38], strides = [1, 1]} : vector<22x38xf32> to vector<16x38xf32>
      %272 = vector.broadcast %266 : f32 to vector<16x38xf32>
      %273 = arith.mulf %272, %271 : vector<16x38xf32>
      %274 = arith.addf %270, %273 : vector<16x38xf32>
      %c10 = arith.constant 10 : index
      %275 = memref.load %arg2[%c10] : memref<98xf32, #tpu.memory_space<smem>>
      %c59 = arith.constant 59 : index
      %276 = memref.load %arg2[%c59] : memref<98xf32, #tpu.memory_space<smem>>
      %277 = vector.extract_strided_slice %263 {offsets = [1, 0], sizes = [16, 38], strides = [1, 1]} : vector<22x38xf32> to vector<16x38xf32>
      %278 = vector.broadcast %275 : f32 to vector<16x38xf32>
      %279 = arith.mulf %278, %277 : vector<16x38xf32>
      %280 = arith.addf %274, %279 : vector<16x38xf32>
      %281 = vector.extract_strided_slice %264 {offsets = [1, 0], sizes = [16, 38], strides = [1, 1]} : vector<22x38xf32> to vector<16x38xf32>
      %282 = vector.broadcast %276 : f32 to vector<16x38xf32>
      %283 = arith.mulf %282, %281 : vector<16x38xf32>
      %284 = arith.addf %280, %283 : vector<16x38xf32>
      %c17 = arith.constant 17 : index
      %285 = memref.load %arg2[%c17] : memref<98xf32, #tpu.memory_space<smem>>
      %c66 = arith.constant 66 : index
      %286 = memref.load %arg2[%c66] : memref<98xf32, #tpu.memory_space<smem>>
      %287 = vector.extract_strided_slice %263 {offsets = [2, 0], sizes = [16, 38], strides = [1, 1]} : vector<22x38xf32> to vector<16x38xf32>
      %288 = vector.broadcast %285 : f32 to vector<16x38xf32>
      %289 = arith.mulf %288, %287 : vector<16x38xf32>
      %290 = arith.addf %284, %289 : vector<16x38xf32>
      %291 = vector.extract_strided_slice %264 {offsets = [2, 0], sizes = [16, 38], strides = [1, 1]} : vector<22x38xf32> to vector<16x38xf32>
      %292 = vector.broadcast %286 : f32 to vector<16x38xf32>
      %293 = arith.mulf %292, %291 : vector<16x38xf32>
      %294 = arith.addf %290, %293 : vector<16x38xf32>
      %c24 = arith.constant 24 : index
      %295 = memref.load %arg2[%c24] : memref<98xf32, #tpu.memory_space<smem>>
      %c73 = arith.constant 73 : index
      %296 = memref.load %arg2[%c73] : memref<98xf32, #tpu.memory_space<smem>>
      %297 = vector.extract_strided_slice %263 {offsets = [3, 0], sizes = [16, 38], strides = [1, 1]} : vector<22x38xf32> to vector<16x38xf32>
      %298 = vector.broadcast %295 : f32 to vector<16x38xf32>
      %299 = arith.mulf %298, %297 : vector<16x38xf32>
      %300 = arith.addf %294, %299 : vector<16x38xf32>
      %301 = vector.extract_strided_slice %264 {offsets = [3, 0], sizes = [16, 38], strides = [1, 1]} : vector<22x38xf32> to vector<16x38xf32>
      %302 = vector.broadcast %296 : f32 to vector<16x38xf32>
      %303 = arith.mulf %302, %301 : vector<16x38xf32>
      %304 = arith.addf %300, %303 : vector<16x38xf32>
      %c31 = arith.constant 31 : index
      %305 = memref.load %arg2[%c31] : memref<98xf32, #tpu.memory_space<smem>>
      %c80 = arith.constant 80 : index
      %306 = memref.load %arg2[%c80] : memref<98xf32, #tpu.memory_space<smem>>
      %307 = vector.extract_strided_slice %263 {offsets = [4, 0], sizes = [16, 38], strides = [1, 1]} : vector<22x38xf32> to vector<16x38xf32>
      %308 = vector.broadcast %305 : f32 to vector<16x38xf32>
      %309 = arith.mulf %308, %307 : vector<16x38xf32>
      %310 = arith.addf %304, %309 : vector<16x38xf32>
      %311 = vector.extract_strided_slice %264 {offsets = [4, 0], sizes = [16, 38], strides = [1, 1]} : vector<22x38xf32> to vector<16x38xf32>
      %312 = vector.broadcast %306 : f32 to vector<16x38xf32>
      %313 = arith.mulf %312, %311 : vector<16x38xf32>
      %314 = arith.addf %310, %313 : vector<16x38xf32>
      %c38 = arith.constant 38 : index
      %315 = memref.load %arg2[%c38] : memref<98xf32, #tpu.memory_space<smem>>
      %c87 = arith.constant 87 : index
      %316 = memref.load %arg2[%c87] : memref<98xf32, #tpu.memory_space<smem>>
      %317 = vector.extract_strided_slice %263 {offsets = [5, 0], sizes = [16, 38], strides = [1, 1]} : vector<22x38xf32> to vector<16x38xf32>
      %318 = vector.broadcast %315 : f32 to vector<16x38xf32>
      %319 = arith.mulf %318, %317 : vector<16x38xf32>
      %320 = arith.addf %314, %319 : vector<16x38xf32>
      %321 = vector.extract_strided_slice %264 {offsets = [5, 0], sizes = [16, 38], strides = [1, 1]} : vector<22x38xf32> to vector<16x38xf32>
      %322 = vector.broadcast %316 : f32 to vector<16x38xf32>
      %323 = arith.mulf %322, %321 : vector<16x38xf32>
      %324 = arith.addf %320, %323 : vector<16x38xf32>
      %c45 = arith.constant 45 : index
      %325 = memref.load %arg2[%c45] : memref<98xf32, #tpu.memory_space<smem>>
      %c94 = arith.constant 94 : index
      %326 = memref.load %arg2[%c94] : memref<98xf32, #tpu.memory_space<smem>>
      %327 = vector.extract_strided_slice %263 {offsets = [6, 0], sizes = [16, 38], strides = [1, 1]} : vector<22x38xf32> to vector<16x38xf32>
      %328 = vector.broadcast %325 : f32 to vector<16x38xf32>
      %329 = arith.mulf %328, %327 : vector<16x38xf32>
      %330 = arith.addf %324, %329 : vector<16x38xf32>
      %331 = vector.extract_strided_slice %264 {offsets = [6, 0], sizes = [16, 38], strides = [1, 1]} : vector<22x38xf32> to vector<16x38xf32>
      %332 = vector.broadcast %326 : f32 to vector<16x38xf32>
      %333 = arith.mulf %332, %331 : vector<16x38xf32>
      %334 = arith.addf %330, %333 : vector<16x38xf32>
      %c0_49 = arith.constant 0 : index
      %c4 = arith.constant 4 : index
      %335 = vector.load %arg7[%c0_49, %c4] : memref<22x44xf32, #tpu.memory_space<vmem>>, vector<22x38xf32>
      %c0_50 = arith.constant 0 : index
      %c4_51 = arith.constant 4 : index
      %336 = vector.load %arg8[%c0_50, %c4_51] : memref<22x44xf32, #tpu.memory_space<vmem>>, vector<22x38xf32>
      %c4_52 = arith.constant 4 : index
      %337 = memref.load %arg2[%c4_52] : memref<98xf32, #tpu.memory_space<smem>>
      %c53 = arith.constant 53 : index
      %338 = memref.load %arg2[%c53] : memref<98xf32, #tpu.memory_space<smem>>
      %339 = vector.extract_strided_slice %335 {offsets = [0, 0], sizes = [16, 38], strides = [1, 1]} : vector<22x38xf32> to vector<16x38xf32>
      %340 = vector.broadcast %337 : f32 to vector<16x38xf32>
      %341 = arith.mulf %340, %339 : vector<16x38xf32>
      %342 = arith.addf %334, %341 : vector<16x38xf32>
      %343 = vector.extract_strided_slice %336 {offsets = [0, 0], sizes = [16, 38], strides = [1, 1]} : vector<22x38xf32> to vector<16x38xf32>
      %344 = vector.broadcast %338 : f32 to vector<16x38xf32>
      %345 = arith.mulf %344, %343 : vector<16x38xf32>
      %346 = arith.addf %342, %345 : vector<16x38xf32>
      %c11 = arith.constant 11 : index
      %347 = memref.load %arg2[%c11] : memref<98xf32, #tpu.memory_space<smem>>
      %c60 = arith.constant 60 : index
      %348 = memref.load %arg2[%c60] : memref<98xf32, #tpu.memory_space<smem>>
      %349 = vector.extract_strided_slice %335 {offsets = [1, 0], sizes = [16, 38], strides = [1, 1]} : vector<22x38xf32> to vector<16x38xf32>
      %350 = vector.broadcast %347 : f32 to vector<16x38xf32>
      %351 = arith.mulf %350, %349 : vector<16x38xf32>
      %352 = arith.addf %346, %351 : vector<16x38xf32>
      %353 = vector.extract_strided_slice %336 {offsets = [1, 0], sizes = [16, 38], strides = [1, 1]} : vector<22x38xf32> to vector<16x38xf32>
      %354 = vector.broadcast %348 : f32 to vector<16x38xf32>
      %355 = arith.mulf %354, %353 : vector<16x38xf32>
      %356 = arith.addf %352, %355 : vector<16x38xf32>
      %c18 = arith.constant 18 : index
      %357 = memref.load %arg2[%c18] : memref<98xf32, #tpu.memory_space<smem>>
      %c67 = arith.constant 67 : index
      %358 = memref.load %arg2[%c67] : memref<98xf32, #tpu.memory_space<smem>>
      %359 = vector.extract_strided_slice %335 {offsets = [2, 0], sizes = [16, 38], strides = [1, 1]} : vector<22x38xf32> to vector<16x38xf32>
      %360 = vector.broadcast %357 : f32 to vector<16x38xf32>
      %361 = arith.mulf %360, %359 : vector<16x38xf32>
      %362 = arith.addf %356, %361 : vector<16x38xf32>
      %363 = vector.extract_strided_slice %336 {offsets = [2, 0], sizes = [16, 38], strides = [1, 1]} : vector<22x38xf32> to vector<16x38xf32>
      %364 = vector.broadcast %358 : f32 to vector<16x38xf32>
      %365 = arith.mulf %364, %363 : vector<16x38xf32>
      %366 = arith.addf %362, %365 : vector<16x38xf32>
      %c25 = arith.constant 25 : index
      %367 = memref.load %arg2[%c25] : memref<98xf32, #tpu.memory_space<smem>>
      %c74 = arith.constant 74 : index
      %368 = memref.load %arg2[%c74] : memref<98xf32, #tpu.memory_space<smem>>
      %369 = vector.extract_strided_slice %335 {offsets = [3, 0], sizes = [16, 38], strides = [1, 1]} : vector<22x38xf32> to vector<16x38xf32>
      %370 = vector.broadcast %367 : f32 to vector<16x38xf32>
      %371 = arith.mulf %370, %369 : vector<16x38xf32>
      %372 = arith.addf %366, %371 : vector<16x38xf32>
      %373 = vector.extract_strided_slice %336 {offsets = [3, 0], sizes = [16, 38], strides = [1, 1]} : vector<22x38xf32> to vector<16x38xf32>
      %374 = vector.broadcast %368 : f32 to vector<16x38xf32>
      %375 = arith.mulf %374, %373 : vector<16x38xf32>
      %376 = arith.addf %372, %375 : vector<16x38xf32>
      %c32 = arith.constant 32 : index
      %377 = memref.load %arg2[%c32] : memref<98xf32, #tpu.memory_space<smem>>
      %c81 = arith.constant 81 : index
      %378 = memref.load %arg2[%c81] : memref<98xf32, #tpu.memory_space<smem>>
      %379 = vector.extract_strided_slice %335 {offsets = [4, 0], sizes = [16, 38], strides = [1, 1]} : vector<22x38xf32> to vector<16x38xf32>
      %380 = vector.broadcast %377 : f32 to vector<16x38xf32>
      %381 = arith.mulf %380, %379 : vector<16x38xf32>
      %382 = arith.addf %376, %381 : vector<16x38xf32>
      %383 = vector.extract_strided_slice %336 {offsets = [4, 0], sizes = [16, 38], strides = [1, 1]} : vector<22x38xf32> to vector<16x38xf32>
      %384 = vector.broadcast %378 : f32 to vector<16x38xf32>
      %385 = arith.mulf %384, %383 : vector<16x38xf32>
      %386 = arith.addf %382, %385 : vector<16x38xf32>
      %c39 = arith.constant 39 : index
      %387 = memref.load %arg2[%c39] : memref<98xf32, #tpu.memory_space<smem>>
      %c88 = arith.constant 88 : index
      %388 = memref.load %arg2[%c88] : memref<98xf32, #tpu.memory_space<smem>>
      %389 = vector.extract_strided_slice %335 {offsets = [5, 0], sizes = [16, 38], strides = [1, 1]} : vector<22x38xf32> to vector<16x38xf32>
      %390 = vector.broadcast %387 : f32 to vector<16x38xf32>
      %391 = arith.mulf %390, %389 : vector<16x38xf32>
      %392 = arith.addf %386, %391 : vector<16x38xf32>
      %393 = vector.extract_strided_slice %336 {offsets = [5, 0], sizes = [16, 38], strides = [1, 1]} : vector<22x38xf32> to vector<16x38xf32>
      %394 = vector.broadcast %388 : f32 to vector<16x38xf32>
      %395 = arith.mulf %394, %393 : vector<16x38xf32>
      %396 = arith.addf %392, %395 : vector<16x38xf32>
      %c46 = arith.constant 46 : index
      %397 = memref.load %arg2[%c46] : memref<98xf32, #tpu.memory_space<smem>>
      %c95 = arith.constant 95 : index
      %398 = memref.load %arg2[%c95] : memref<98xf32, #tpu.memory_space<smem>>
      %399 = vector.extract_strided_slice %335 {offsets = [6, 0], sizes = [16, 38], strides = [1, 1]} : vector<22x38xf32> to vector<16x38xf32>
      %400 = vector.broadcast %397 : f32 to vector<16x38xf32>
      %401 = arith.mulf %400, %399 : vector<16x38xf32>
      %402 = arith.addf %396, %401 : vector<16x38xf32>
      %403 = vector.extract_strided_slice %336 {offsets = [6, 0], sizes = [16, 38], strides = [1, 1]} : vector<22x38xf32> to vector<16x38xf32>
      %404 = vector.broadcast %398 : f32 to vector<16x38xf32>
      %405 = arith.mulf %404, %403 : vector<16x38xf32>
      %406 = arith.addf %402, %405 : vector<16x38xf32>
      %c0_53 = arith.constant 0 : index
      %c5 = arith.constant 5 : index
      %407 = vector.load %arg7[%c0_53, %c5] : memref<22x44xf32, #tpu.memory_space<vmem>>, vector<22x38xf32>
      %c0_54 = arith.constant 0 : index
      %c5_55 = arith.constant 5 : index
      %408 = vector.load %arg8[%c0_54, %c5_55] : memref<22x44xf32, #tpu.memory_space<vmem>>, vector<22x38xf32>
      %c5_56 = arith.constant 5 : index
      %409 = memref.load %arg2[%c5_56] : memref<98xf32, #tpu.memory_space<smem>>
      %c54 = arith.constant 54 : index
      %410 = memref.load %arg2[%c54] : memref<98xf32, #tpu.memory_space<smem>>
      %411 = vector.extract_strided_slice %407 {offsets = [0, 0], sizes = [16, 38], strides = [1, 1]} : vector<22x38xf32> to vector<16x38xf32>
      %412 = vector.broadcast %409 : f32 to vector<16x38xf32>
      %413 = arith.mulf %412, %411 : vector<16x38xf32>
      %414 = arith.addf %406, %413 : vector<16x38xf32>
      %415 = vector.extract_strided_slice %408 {offsets = [0, 0], sizes = [16, 38], strides = [1, 1]} : vector<22x38xf32> to vector<16x38xf32>
      %416 = vector.broadcast %410 : f32 to vector<16x38xf32>
      %417 = arith.mulf %416, %415 : vector<16x38xf32>
      %418 = arith.addf %414, %417 : vector<16x38xf32>
      %c12 = arith.constant 12 : index
      %419 = memref.load %arg2[%c12] : memref<98xf32, #tpu.memory_space<smem>>
      %c61 = arith.constant 61 : index
      %420 = memref.load %arg2[%c61] : memref<98xf32, #tpu.memory_space<smem>>
      %421 = vector.extract_strided_slice %407 {offsets = [1, 0], sizes = [16, 38], strides = [1, 1]} : vector<22x38xf32> to vector<16x38xf32>
      %422 = vector.broadcast %419 : f32 to vector<16x38xf32>
      %423 = arith.mulf %422, %421 : vector<16x38xf32>
      %424 = arith.addf %418, %423 : vector<16x38xf32>
      %425 = vector.extract_strided_slice %408 {offsets = [1, 0], sizes = [16, 38], strides = [1, 1]} : vector<22x38xf32> to vector<16x38xf32>
      %426 = vector.broadcast %420 : f32 to vector<16x38xf32>
      %427 = arith.mulf %426, %425 : vector<16x38xf32>
      %428 = arith.addf %424, %427 : vector<16x38xf32>
      %c19 = arith.constant 19 : index
      %429 = memref.load %arg2[%c19] : memref<98xf32, #tpu.memory_space<smem>>
      %c68 = arith.constant 68 : index
      %430 = memref.load %arg2[%c68] : memref<98xf32, #tpu.memory_space<smem>>
      %431 = vector.extract_strided_slice %407 {offsets = [2, 0], sizes = [16, 38], strides = [1, 1]} : vector<22x38xf32> to vector<16x38xf32>
      %432 = vector.broadcast %429 : f32 to vector<16x38xf32>
      %433 = arith.mulf %432, %431 : vector<16x38xf32>
      %434 = arith.addf %428, %433 : vector<16x38xf32>
      %435 = vector.extract_strided_slice %408 {offsets = [2, 0], sizes = [16, 38], strides = [1, 1]} : vector<22x38xf32> to vector<16x38xf32>
      %436 = vector.broadcast %430 : f32 to vector<16x38xf32>
      %437 = arith.mulf %436, %435 : vector<16x38xf32>
      %438 = arith.addf %434, %437 : vector<16x38xf32>
      %c26 = arith.constant 26 : index
      %439 = memref.load %arg2[%c26] : memref<98xf32, #tpu.memory_space<smem>>
      %c75 = arith.constant 75 : index
      %440 = memref.load %arg2[%c75] : memref<98xf32, #tpu.memory_space<smem>>
      %441 = vector.extract_strided_slice %407 {offsets = [3, 0], sizes = [16, 38], strides = [1, 1]} : vector<22x38xf32> to vector<16x38xf32>
      %442 = vector.broadcast %439 : f32 to vector<16x38xf32>
      %443 = arith.mulf %442, %441 : vector<16x38xf32>
      %444 = arith.addf %438, %443 : vector<16x38xf32>
      %445 = vector.extract_strided_slice %408 {offsets = [3, 0], sizes = [16, 38], strides = [1, 1]} : vector<22x38xf32> to vector<16x38xf32>
      %446 = vector.broadcast %440 : f32 to vector<16x38xf32>
      %447 = arith.mulf %446, %445 : vector<16x38xf32>
      %448 = arith.addf %444, %447 : vector<16x38xf32>
      %c33 = arith.constant 33 : index
      %449 = memref.load %arg2[%c33] : memref<98xf32, #tpu.memory_space<smem>>
      %c82 = arith.constant 82 : index
      %450 = memref.load %arg2[%c82] : memref<98xf32, #tpu.memory_space<smem>>
      %451 = vector.extract_strided_slice %407 {offsets = [4, 0], sizes = [16, 38], strides = [1, 1]} : vector<22x38xf32> to vector<16x38xf32>
      %452 = vector.broadcast %449 : f32 to vector<16x38xf32>
      %453 = arith.mulf %452, %451 : vector<16x38xf32>
      %454 = arith.addf %448, %453 : vector<16x38xf32>
      %455 = vector.extract_strided_slice %408 {offsets = [4, 0], sizes = [16, 38], strides = [1, 1]} : vector<22x38xf32> to vector<16x38xf32>
      %456 = vector.broadcast %450 : f32 to vector<16x38xf32>
      %457 = arith.mulf %456, %455 : vector<16x38xf32>
      %458 = arith.addf %454, %457 : vector<16x38xf32>
      %c40 = arith.constant 40 : index
      %459 = memref.load %arg2[%c40] : memref<98xf32, #tpu.memory_space<smem>>
      %c89 = arith.constant 89 : index
      %460 = memref.load %arg2[%c89] : memref<98xf32, #tpu.memory_space<smem>>
      %461 = vector.extract_strided_slice %407 {offsets = [5, 0], sizes = [16, 38], strides = [1, 1]} : vector<22x38xf32> to vector<16x38xf32>
      %462 = vector.broadcast %459 : f32 to vector<16x38xf32>
      %463 = arith.mulf %462, %461 : vector<16x38xf32>
      %464 = arith.addf %458, %463 : vector<16x38xf32>
      %465 = vector.extract_strided_slice %408 {offsets = [5, 0], sizes = [16, 38], strides = [1, 1]} : vector<22x38xf32> to vector<16x38xf32>
      %466 = vector.broadcast %460 : f32 to vector<16x38xf32>
      %467 = arith.mulf %466, %465 : vector<16x38xf32>
      %468 = arith.addf %464, %467 : vector<16x38xf32>
      %c47 = arith.constant 47 : index
      %469 = memref.load %arg2[%c47] : memref<98xf32, #tpu.memory_space<smem>>
      %c96 = arith.constant 96 : index
      %470 = memref.load %arg2[%c96] : memref<98xf32, #tpu.memory_space<smem>>
      %471 = vector.extract_strided_slice %407 {offsets = [6, 0], sizes = [16, 38], strides = [1, 1]} : vector<22x38xf32> to vector<16x38xf32>
      %472 = vector.broadcast %469 : f32 to vector<16x38xf32>
      %473 = arith.mulf %472, %471 : vector<16x38xf32>
      %474 = arith.addf %468, %473 : vector<16x38xf32>
      %475 = vector.extract_strided_slice %408 {offsets = [6, 0], sizes = [16, 38], strides = [1, 1]} : vector<22x38xf32> to vector<16x38xf32>
      %476 = vector.broadcast %470 : f32 to vector<16x38xf32>
      %477 = arith.mulf %476, %475 : vector<16x38xf32>
      %478 = arith.addf %474, %477 : vector<16x38xf32>
      %c0_57 = arith.constant 0 : index
      %c6 = arith.constant 6 : index
      %479 = vector.load %arg7[%c0_57, %c6] : memref<22x44xf32, #tpu.memory_space<vmem>>, vector<22x38xf32>
      %c0_58 = arith.constant 0 : index
      %c6_59 = arith.constant 6 : index
      %480 = vector.load %arg8[%c0_58, %c6_59] : memref<22x44xf32, #tpu.memory_space<vmem>>, vector<22x38xf32>
      %c6_60 = arith.constant 6 : index
      %481 = memref.load %arg2[%c6_60] : memref<98xf32, #tpu.memory_space<smem>>
      %c55 = arith.constant 55 : index
      %482 = memref.load %arg2[%c55] : memref<98xf32, #tpu.memory_space<smem>>
      %483 = vector.extract_strided_slice %479 {offsets = [0, 0], sizes = [16, 38], strides = [1, 1]} : vector<22x38xf32> to vector<16x38xf32>
      %484 = vector.broadcast %481 : f32 to vector<16x38xf32>
      %485 = arith.mulf %484, %483 : vector<16x38xf32>
      %486 = arith.addf %478, %485 : vector<16x38xf32>
      %487 = vector.extract_strided_slice %480 {offsets = [0, 0], sizes = [16, 38], strides = [1, 1]} : vector<22x38xf32> to vector<16x38xf32>
      %488 = vector.broadcast %482 : f32 to vector<16x38xf32>
      %489 = arith.mulf %488, %487 : vector<16x38xf32>
      %490 = arith.addf %486, %489 : vector<16x38xf32>
      %c13 = arith.constant 13 : index
      %491 = memref.load %arg2[%c13] : memref<98xf32, #tpu.memory_space<smem>>
      %c62 = arith.constant 62 : index
      %492 = memref.load %arg2[%c62] : memref<98xf32, #tpu.memory_space<smem>>
      %493 = vector.extract_strided_slice %479 {offsets = [1, 0], sizes = [16, 38], strides = [1, 1]} : vector<22x38xf32> to vector<16x38xf32>
      %494 = vector.broadcast %491 : f32 to vector<16x38xf32>
      %495 = arith.mulf %494, %493 : vector<16x38xf32>
      %496 = arith.addf %490, %495 : vector<16x38xf32>
      %497 = vector.extract_strided_slice %480 {offsets = [1, 0], sizes = [16, 38], strides = [1, 1]} : vector<22x38xf32> to vector<16x38xf32>
      %498 = vector.broadcast %492 : f32 to vector<16x38xf32>
      %499 = arith.mulf %498, %497 : vector<16x38xf32>
      %500 = arith.addf %496, %499 : vector<16x38xf32>
      %c20 = arith.constant 20 : index
      %501 = memref.load %arg2[%c20] : memref<98xf32, #tpu.memory_space<smem>>
      %c69 = arith.constant 69 : index
      %502 = memref.load %arg2[%c69] : memref<98xf32, #tpu.memory_space<smem>>
      %503 = vector.extract_strided_slice %479 {offsets = [2, 0], sizes = [16, 38], strides = [1, 1]} : vector<22x38xf32> to vector<16x38xf32>
      %504 = vector.broadcast %501 : f32 to vector<16x38xf32>
      %505 = arith.mulf %504, %503 : vector<16x38xf32>
      %506 = arith.addf %500, %505 : vector<16x38xf32>
      %507 = vector.extract_strided_slice %480 {offsets = [2, 0], sizes = [16, 38], strides = [1, 1]} : vector<22x38xf32> to vector<16x38xf32>
      %508 = vector.broadcast %502 : f32 to vector<16x38xf32>
      %509 = arith.mulf %508, %507 : vector<16x38xf32>
      %510 = arith.addf %506, %509 : vector<16x38xf32>
      %c27 = arith.constant 27 : index
      %511 = memref.load %arg2[%c27] : memref<98xf32, #tpu.memory_space<smem>>
      %c76 = arith.constant 76 : index
      %512 = memref.load %arg2[%c76] : memref<98xf32, #tpu.memory_space<smem>>
      %513 = vector.extract_strided_slice %479 {offsets = [3, 0], sizes = [16, 38], strides = [1, 1]} : vector<22x38xf32> to vector<16x38xf32>
      %514 = vector.broadcast %511 : f32 to vector<16x38xf32>
      %515 = arith.mulf %514, %513 : vector<16x38xf32>
      %516 = arith.addf %510, %515 : vector<16x38xf32>
      %517 = vector.extract_strided_slice %480 {offsets = [3, 0], sizes = [16, 38], strides = [1, 1]} : vector<22x38xf32> to vector<16x38xf32>
      %518 = vector.broadcast %512 : f32 to vector<16x38xf32>
      %519 = arith.mulf %518, %517 : vector<16x38xf32>
      %520 = arith.addf %516, %519 : vector<16x38xf32>
      %c34 = arith.constant 34 : index
      %521 = memref.load %arg2[%c34] : memref<98xf32, #tpu.memory_space<smem>>
      %c83 = arith.constant 83 : index
      %522 = memref.load %arg2[%c83] : memref<98xf32, #tpu.memory_space<smem>>
      %523 = vector.extract_strided_slice %479 {offsets = [4, 0], sizes = [16, 38], strides = [1, 1]} : vector<22x38xf32> to vector<16x38xf32>
      %524 = vector.broadcast %521 : f32 to vector<16x38xf32>
      %525 = arith.mulf %524, %523 : vector<16x38xf32>
      %526 = arith.addf %520, %525 : vector<16x38xf32>
      %527 = vector.extract_strided_slice %480 {offsets = [4, 0], sizes = [16, 38], strides = [1, 1]} : vector<22x38xf32> to vector<16x38xf32>
      %528 = vector.broadcast %522 : f32 to vector<16x38xf32>
      %529 = arith.mulf %528, %527 : vector<16x38xf32>
      %530 = arith.addf %526, %529 : vector<16x38xf32>
      %c41 = arith.constant 41 : index
      %531 = memref.load %arg2[%c41] : memref<98xf32, #tpu.memory_space<smem>>
      %c90 = arith.constant 90 : index
      %532 = memref.load %arg2[%c90] : memref<98xf32, #tpu.memory_space<smem>>
      %533 = vector.extract_strided_slice %479 {offsets = [5, 0], sizes = [16, 38], strides = [1, 1]} : vector<22x38xf32> to vector<16x38xf32>
      %534 = vector.broadcast %531 : f32 to vector<16x38xf32>
      %535 = arith.mulf %534, %533 : vector<16x38xf32>
      %536 = arith.addf %530, %535 : vector<16x38xf32>
      %537 = vector.extract_strided_slice %480 {offsets = [5, 0], sizes = [16, 38], strides = [1, 1]} : vector<22x38xf32> to vector<16x38xf32>
      %538 = vector.broadcast %532 : f32 to vector<16x38xf32>
      %539 = arith.mulf %538, %537 : vector<16x38xf32>
      %540 = arith.addf %536, %539 : vector<16x38xf32>
      %c48 = arith.constant 48 : index
      %541 = memref.load %arg2[%c48] : memref<98xf32, #tpu.memory_space<smem>>
      %c97 = arith.constant 97 : index
      %542 = memref.load %arg2[%c97] : memref<98xf32, #tpu.memory_space<smem>>
      %543 = vector.extract_strided_slice %479 {offsets = [6, 0], sizes = [16, 38], strides = [1, 1]} : vector<22x38xf32> to vector<16x38xf32>
      %544 = vector.broadcast %541 : f32 to vector<16x38xf32>
      %545 = arith.mulf %544, %543 : vector<16x38xf32>
      %546 = arith.addf %540, %545 : vector<16x38xf32>
      %547 = vector.extract_strided_slice %480 {offsets = [6, 0], sizes = [16, 38], strides = [1, 1]} : vector<22x38xf32> to vector<16x38xf32>
      %548 = vector.broadcast %542 : f32 to vector<16x38xf32>
      %549 = arith.mulf %548, %547 : vector<16x38xf32>
      %550 = arith.addf %546, %549 : vector<16x38xf32>
      %551 = vector.extract_strided_slice %550 {offsets = [0, 0], sizes = [16, 16], strides = [1, 1]} : vector<16x38xf32> to vector<16x16xf32>
      %552 = vector.extract_strided_slice %550 {offsets = [0, 22], sizes = [16, 16], strides = [1, 1]} : vector<16x38xf32> to vector<16x16xf32>
      %553 = tpu.concatenate %551, %552 in 1 : vector<16x16xf32>, vector<16x16xf32> -> vector<16x32xf32>
      %554 = arith.negf %553 : vector<16x32xf32>
      %555 = math.exp %554 : vector<16x32xf32>
      %cst_61 = arith.constant 1.000000e+00 : f32
      %556 = vector.broadcast %cst_61 : f32 to vector<16x32xf32>
      %557 = arith.addf %556, %555 : vector<16x32xf32>
      %558 = arith.divf %556, %557 : vector<16x32xf32>
      %c0_62 = arith.constant 0 : index
      %c0_63 = arith.constant 0 : index
      %c0_64 = arith.constant 0 : index
      %559 = vector.load %arg4[%c0_62, %c0_63, %c0_64] : memref<1x16x32xf32, #tpu.memory_space<vmem>>, vector<1x16x32xf32>
      %560 = vector.shape_cast %559 : vector<1x16x32xf32> to vector<16x32xf32>
      %561 = vector.shape_cast %558 : vector<16x32xf32> to vector<1x16x32xf32>
      tpu.vector_store %arg4[%c0_62, %c0_63, %c0_64], %561 {strides = array<i32>} : memref<1x16x32xf32, #tpu.memory_space<vmem>>, vector<1x16x32xf32>,
    } else {
    }
    return
  }
  func.func @transform_0(%arg0: i32, %arg1: i32) -> i32 {
    %c0_i32 = arith.constant 0 : i32
    %c0_i32_0 = arith.constant 0 : i32
    return %c0_i32 : i32
  }
  func.func @transform_1(%arg0: i32, %arg1: i32) -> (i32, i32, i32) {
    %c0_i32 = arith.constant 0 : i32
    %c0_i32_0 = arith.constant 0 : i32
    return %arg0, %arg1, %c0_i32 : i32, i32, i32
  }
  func.func @transform_2(%arg0: i32, %arg1: i32) -> (i32, i32, i32) {
    %c0_i32 = arith.constant 0 : i32
    %c0_i32_0 = arith.constant 0 : i32
    %c0_i32_1 = arith.constant 0 : i32
    return %arg0, %c0_i32, %c0_i32_0 : i32, i32, i32
  }
}

</mosaic_0001>

<llo_original>
// kernel: tpu_custom_call.1
$region0: #{tpu_custom_call.1}
  #allocation0 [shape = 'u32[]', space=smem, size = 0x4, offset = 0x4, fixed_abs, tag = 'smem constant byte address 0x4 - core index']
  #allocation1 [shape = 'u32[144,128]{1,0:T(1,128)}', space=vmem, size = 0x12000, scoped, tag = 'internal scratch']
  #allocation2 [shape = 'f32[2,256]{1,0:T(2,128)}', space=vmem, size = 0x800, scoped, tag = 'scratch operand']
  #allocation3 [shape = 'f32[2,256]{1,0:T(2,128)}', space=vmem, size = 0x800, scoped, tag = 'scratch operand']
  #allocation4 [shape = 'f32[22,44]{1,0:T(8,128)}', space=vmem, size = 0x3000, scoped, tag = 'scratch operand']
  #allocation5 [shape = 'f32[22,44]{1,0:T(8,128)}', space=vmem, size = 0x3000, scoped, tag = 'scratch operand']
  %s0 = inlined_call_operand.hbm [shape: f32[98], index: 0, kind: input, shape index: {}]
  %s1 = inlined_call_operand.hbm [shape: f32[2,4,256], index: 1, kind: input, shape index: {}]
  %s2 = inlined_call_operand.hbm [shape: f32[1,16,32], index: 2, kind: output, shape index: {}]
  %s3 = sld [smem:[#allocation0]]
  $region34: #{tpu_custom_call.1} parent=0
    _
  %s5 = ssub.s32 1, %s3
  %s6 = scalar_select 0, %s5, %s3
  $region1: #{tpu_custom_call.1} parent=0
    #allocation6 [shape = 'u8[512]{0}', space=smem, size = 0x200, scoped, tag = 'input window, operand 0, single buffered']
    #allocation7 [shape = 's32[1]{0}', space=sflag, size = 0x4, scoped, tag = 'scoped memory for tpu_custom_call.1']
    #allocation8 [shape = 's32[1]{0}', space=sflag, size = 0x4, scoped, tag = 'scoped memory for tpu_custom_call.1']
    #allocation9 [shape = 's32[1]{0}', space=sflag, size = 0x4, scoped, tag = 'scoped memory for tpu_custom_call.1']
    #allocation10 [shape = 'u8[8192]{0}', space=vmem, size = 0x2000, scoped, tag = 'input window, operand 1, single buffered']
    #allocation11 [shape = 'u8[8192]{0}', space=vmem, size = 0x2000, scoped, tag = 'output window, operand 0, single buffered']
    %7 = vsyncpa [#allocation9], 0
    %8 = vsyncpa [#allocation7], 0
    %9 = vsyncpa [#allocation8], 0
    // Predicated region
    $region2: #{tpu_custom_call.1} parent=1 // pred_check
      _
    $region3: #{tpu_custom_call.1} parent=1 // pred_check_branch
      %11 = sbr.rel (0) target = $region5
    $region4: #{tpu_custom_call.1} parent=1 // pred_region
      %s13 = ssub.s32 16, 16
      %14 = vsyncadd [#allocation9], %s13
      %17 = dma.hbm_to_smem %s0, 16, [#allocation6], [#allocation9]
    $region5: #{tpu_custom_call.1} parent=1 // pred_fallthru
      _
    // Predicated region
    $region6: #{tpu_custom_call.1} parent=1 // pred_check
      _
    $region7: #{tpu_custom_call.1} parent=1 // pred_check_branch
      %19 = sbr.rel (0) target = $region9
    $region8: #{tpu_custom_call.1} parent=1 // pred_region
      %s21 = ssub.s32 256, 256
      %22 = vsyncadd [#allocation7], %s21
      %s23 = sshll.u32 [#allocation10], 4
      %s24 = int_to_ptr.vmem [resolvable:$true] %s23
      %29 = dma.hbm_to_vmem [thread:$0]  %s1, 256, %s24, [#allocation7], 128, 128, 8
    $region9: #{tpu_custom_call.1} parent=1 // pred_fallthru
      _
    // Predicated region
    $region10: #{tpu_custom_call.1} parent=1 // pred_check
      _
    $region11: #{tpu_custom_call.1} parent=1 // pred_check_branch
      %31 = sbr.rel (0) target = $region13
    $region12: #{tpu_custom_call.1} parent=1 // pred_region
      %32 = dma.done [#allocation9], 16
    $region13: #{tpu_custom_call.1} parent=1 // pred_fallthru
      _
    // Predicated region
    $region14: #{tpu_custom_call.1} parent=1 // pred_check
      _
    $region15: #{tpu_custom_call.1} parent=1 // pred_check_branch
      %34 = sbr.rel (0) target = $region17
    $region16: #{tpu_custom_call.1} parent=1 // pred_region
      %35 = dma.done [#allocation7], 256
    $region17: #{tpu_custom_call.1} parent=1 // pred_fallthru
      _
    %36 = sfence
    %p37 = scmp.eq.s32.totalorder 0, 0
    // Predicated region
    $region18: #{tpu_custom_call.1} parent=1 // pred_check
      %p38 = pneg %p37
    $region19: #{tpu_custom_call.1} parent=1 // pred_check_branch
      %40 = sbr.rel (%p38) target = $region21
    $region20: #{tpu_custom_call.1} parent=1 // pred_region
      %41 = vst [vmem:[#allocation2] sm:$0xf] 0.0
      %42 = vst [vmem:[#allocation3] sm:$0xf] -inf
    $region21: #{tpu_custom_call.1} parent=1 // pred_fallthru
      _
    %v43 = vld [vmem:[#allocation2] sm:$0xf]
    %v44 = vld [vmem:[#allocation3] sm:$0xf]
    %v45 = vld [vmem:[#allocation10] ss:$4 sm:$0x3]
    %s46 = scalar_lea.vmem [#allocation10], 8
    %v47 = vld [vmem:[%s46] ss:$4 sm:$0x3]
    %v50 = vcombine.low %v45, %v47
    %v52 = vunpack.c.l.s4 1935823168
    %v53 = vunpack.c.0.s8 %v52
    %v54 = vlaneseq
    %v55 = vshrl.u32 %v54, 7
    %v56 = vsub.s32 %v53, %v55
    %v57 = vrot.slane %v50, %v56
    %v59 = vadd.f32 %v43, %v57
    %v60 = vmax.f32 %v44, %v57
    %s61 = scalar_lea.vmem [#allocation10], 1
    %v62 = vld [vmem:[%s61] ss:$4 sm:$0x3]
    %s63 = scalar_lea.vmem [#allocation10], 9
    %v64 = vld [vmem:[%s63] ss:$4 sm:$0x3]
    %v67 = vcombine.low %v62, %v64
    %v69 = vunpack.c.l.s4 1935823168
    %v70 = vunpack.c.0.s8 %v69
    %v71 = vlaneseq
    %v72 = vshrl.u32 %v71, 7
    %v73 = vsub.s32 %v70, %v72
    %v74 = vrot.slane %v67, %v73
    %v76 = vadd.f32 %v59, %v74
    %v77 = vmax.f32 %v60, %v74
    %s78 = scalar_lea.vmem [#allocation10], 2
    %v79 = vld [vmem:[%s78] ss:$4 sm:$0x3]
    %s80 = scalar_lea.vmem [#allocation10], 10
    %v81 = vld [vmem:[%s80] ss:$4 sm:$0x3]
    %v84 = vcombine.low %v79, %v81
    %v86 = vunpack.c.l.s4 1935823168
    %v87 = vunpack.c.0.s8 %v86
    %v88 = vlaneseq
    %v89 = vshrl.u32 %v88, 7
    %v90 = vsub.s32 %v87, %v89
    %v91 = vrot.slane %v84, %v90
    %v93 = vadd.f32 %v76, %v91
    %v94 = vmax.f32 %v77, %v91
    %s95 = scalar_lea.vmem [#allocation10], 3
    %v96 = vld [vmem:[%s95] ss:$4 sm:$0x3]
    %s97 = scalar_lea.vmem [#allocation10], 11
    %v98 = vld [vmem:[%s97] ss:$4 sm:$0x3]
    %v101 = vcombine.low %v96, %v98
    %v103 = vunpack.c.l.s4 1935823168
    %v104 = vunpack.c.0.s8 %v103
    %v105 = vlaneseq
    %v106 = vshrl.u32 %v105, 7
    %v107 = vsub.s32 %v104, %v106
    %v108 = vrot.slane %v101, %v107
    %v110 = vadd.f32 %v93, %v108
    %v111 = vmax.f32 %v94, %v108
    %112 = vst [vmem:[#allocation2] sm:$0xf] %v110
    %113 = vst [vmem:[#allocation3] sm:$0xf] %v111
    // Predicated region
    $region22: #{tpu_custom_call.1} parent=1 // pred_check
      %p114 = pneg %p37
    $region23: #{tpu_custom_call.1} parent=1 // pred_check_branch
      %116 = sbr.rel (%p114) target = $region25
    $region24: #{tpu_custom_call.1} parent=1 // pred_region
      %v117 = vld [vmem:[#allocation2] sm:$0xf]
      %v119 = vrot.slane %v117, 2
      %121 = vrot.lane.b32.xlu0 %v117, 112
      %v122 = vpop.permute.xlu0 %121
      %v123 = vrot.slane %v122, 2
      %125 = vrot.lane.b32.xlu0 %v117, 96
      %v126 = vpop.permute.xlu0 %125
      %v127 = vrot.slane %v126, 2
      %129 = vrot.lane.b32.xlu0 %v117, 80
      %v130 = vpop.permute.xlu0 %129
      %v131 = vrot.slane %v130, 2
      %133 = vrot.lane.b32.xlu0 %v117, 64
      %v134 = vpop.permute.xlu0 %133
      %v135 = vrot.slane %v134, 2
      %137 = vrot.lane.b32.xlu0 %v117, 48
      %v138 = vpop.permute.xlu0 %137
      %v139 = vrot.slane %v138, 2
      %141 = vrot.lane.b32.xlu0 %v117, 32
      %v142 = vpop.permute.xlu0 %141
      %v143 = vrot.slane %v142, 2
      %145 = vrot.lane.b32.xlu0 %v117, 16
      %v146 = vpop.permute.xlu0 %145
      %v147 = vrot.slane %v146, 2
      %v156 = vcombine.low %v117, %v122
      %v158 = vunpack.c.l.s4 1934713408
      %v159 = vunpack.c.0.s8 %v158
      %v160 = vlaneseq
      %v161 = vshrl.u32 %v160, 7
      %v162 = vsub.s32 %v159, %v161
      %v163 = vrot.slane %v156, %v162
      %v164 = vcombine.high %v163, 0.0
      %v165 = vcombine.low %v126, %v130
      %v167 = vunpack.c.l.s4 1934713408
      %v168 = vunpack.c.0.s8 %v167
      %v169 = vlaneseq
      %v170 = vshrl.u32 %v169, 7
      %v171 = vsub.s32 %v168, %v170
      %v172 = vrot.slane %v165, %v171
      %v173 = vcombine.high %v172, 0.0
      %v174 = vcombine.low %v134, %v138
      %v176 = vunpack.c.l.s4 1934713408
      %v177 = vunpack.c.0.s8 %v176
      %v178 = vlaneseq
      %v179 = vshrl.u32 %v178, 7
      %v180 = vsub.s32 %v177, %v179
      %v181 = vrot.slane %v174, %v180
      %v182 = vcombine.high %v181, 0.0
      %v183 = vcombine.low %v142, %v146
      %v185 = vunpack.c.l.s4 1934713408
      %v186 = vunpack.c.0.s8 %v185
      %v187 = vlaneseq
      %v188 = vshrl.u32 %v187, 7
      %v189 = vsub.s32 %v186, %v188
      %v190 = vrot.slane %v183, %v189
      %v191 = vcombine.high %v190, 0.0
      %v192 = vcombine.low %v119, %v123
      %v194 = vunpack.c.l.s4 1934713408
      %v195 = vunpack.c.0.s8 %v194
      %v196 = vlaneseq
      %v197 = vshrl.u32 %v196, 7
      %v198 = vsub.s32 %v195, %v197
      %v199 = vrot.slane %v192, %v198
      %v200 = vcombine.high %v199, 0.0
      %v201 = vcombine.low %v127, %v131
      %v203 = vunpack.c.l.s4 1934713408
      %v204 = vunpack.c.0.s8 %v203
      %v205 = vlaneseq
      %v206 = vshrl.u32 %v205, 7
      %v207 = vsub.s32 %v204, %v206
      %v208 = vrot.slane %v201, %v207
      %v209 = vcombine.high %v208, 0.0
      %v210 = vcombine.low %v135, %v139
      %v212 = vunpack.c.l.s4 1934713408
      %v213 = vunpack.c.0.s8 %v212
      %v214 = vlaneseq
      %v215 = vshrl.u32 %v214, 7
      %v216 = vsub.s32 %v213, %v215
      %v217 = vrot.slane %v210, %v216
      %v218 = vcombine.high %v217, 0.0
      %v219 = vcombine.low %v143, %v147
      %v221 = vunpack.c.l.s4 1934713408
      %v222 = vunpack.c.0.s8 %v221
      %v223 = vlaneseq
      %v224 = vshrl.u32 %v223, 7
      %v225 = vsub.s32 %v222, %v224
      %v226 = vrot.slane %v219, %v225
      %v227 = vcombine.high %v226, 0.0
      %v228 = vld [vmem:[#allocation3] sm:$0xf]
      %v230 = vrot.slane %v228, 2
      %232 = vrot.lane.b32.xlu0 %v228, 112
      %v233 = vpop.permute.xlu0 %232
      %v234 = vrot.slane %v233, 2
      %236 = vrot.lane.b32.xlu0 %v228, 96
      %v237 = vpop.permute.xlu0 %236
      %v238 = vrot.slane %v237, 2
      %240 = vrot.lane.b32.xlu0 %v228, 80
      %v241 = vpop.permute.xlu0 %240
      %v242 = vrot.slane %v241, 2
      %244 = vrot.lane.b32.xlu0 %v228, 64
      %v245 = vpop.permute.xlu0 %244
      %v246 = vrot.slane %v245, 2
      %248 = vrot.lane.b32.xlu0 %v228, 48
      %v249 = vpop.permute.xlu0 %248
      %v250 = vrot.slane %v249, 2
      %252 = vrot.lane.b32.xlu0 %v228, 32
      %v253 = vpop.permute.xlu0 %252
      %v254 = vrot.slane %v253, 2
      %256 = vrot.lane.b32.xlu0 %v228, 16
      %v257 = vpop.permute.xlu0 %256
      %v258 = vrot.slane %v257, 2
      %v267 = vcombine.low %v228, %v233
      %v269 = vunpack.c.l.s4 1934713408
      %v270 = vunpack.c.0.s8 %v269
      %v271 = vlaneseq
      %v272 = vshrl.u32 %v271, 7
      %v273 = vsub.s32 %v270, %v272
      %v274 = vrot.slane %v267, %v273
      %v275 = vcombine.high %v274, 0.0
      %v276 = vcombine.low %v237, %v241
      %v278 = vunpack.c.l.s4 1934713408
      %v279 = vunpack.c.0.s8 %v278
      %v280 = vlaneseq
      %v281 = vshrl.u32 %v280, 7
      %v282 = vsub.s32 %v279, %v281
      %v283 = vrot.slane %v276, %v282
      %v284 = vcombine.high %v283, 0.0
      %v285 = vcombine.low %v245, %v249
      %v287 = vunpack.c.l.s4 1934713408
      %v288 = vunpack.c.0.s8 %v287
      %v289 = vlaneseq
      %v290 = vshrl.u32 %v289, 7
      %v291 = vsub.s32 %v288, %v290
      %v292 = vrot.slane %v285, %v291
      %v293 = vcombine.high %v292, 0.0
      %v294 = vcombine.low %v253, %v257
      %v296 = vunpack.c.l.s4 1934713408
      %v297 = vunpack.c.0.s8 %v296
      %v298 = vlaneseq
      %v299 = vshrl.u32 %v298, 7
      %v300 = vsub.s32 %v297, %v299
      %v301 = vrot.slane %v294, %v300
      %v302 = vcombine.high %v301, 0.0
      %v303 = vcombine.low %v230, %v234
      %v305 = vunpack.c.l.s4 1934713408
      %v306 = vunpack.c.0.s8 %v305
      %v307 = vlaneseq
      %v308 = vshrl.u32 %v307, 7
      %v309 = vsub.s32 %v306, %v308
      %v310 = vrot.slane %v303, %v309
      %v311 = vcombine.high %v310, 0.0
      %v312 = vcombine.low %v238, %v242
      %v314 = vunpack.c.l.s4 1934713408
      %v315 = vunpack.c.0.s8 %v314
      %v316 = vlaneseq
      %v317 = vshrl.u32 %v316, 7
      %v318 = vsub.s32 %v315, %v317
      %v319 = vrot.slane %v312, %v318
      %v320 = vcombine.high %v319, 0.0
      %v321 = vcombine.low %v246, %v250
      %v323 = vunpack.c.l.s4 1934713408
      %v324 = vunpack.c.0.s8 %v323
      %v325 = vlaneseq
      %v326 = vshrl.u32 %v325, 7
      %v327 = vsub.s32 %v324, %v326
      %v328 = vrot.slane %v321, %v327
      %v329 = vcombine.high %v328, 0.0
      %v330 = vcombine.low %v254, %v258
      %v332 = vunpack.c.l.s4 1934713408
      %v333 = vunpack.c.0.s8 %v332
      %v334 = vlaneseq
      %v335 = vshrl.u32 %v334, 7
      %v336 = vsub.s32 %v333, %v335
      %v337 = vrot.slane %v330, %v336
      %v338 = vcombine.high %v337, 0.0
      %v347 = vcombine.low %v163, %v172
      %v348 = vcombine.low %v181, %v190
      %v350 = vunpack.c.l.s4 1983009808
      %v351 = vunpack.c.0.s8 %v350
      %v352 = vlaneseq
      %v353 = vshrl.u32 %v352, 7
      %v354 = vsub.s32 %v351, %v353
      %v355 = vrot.slane %v347, %v354
      %v357 = vunpack.c.l.s4 1983009808
      %v358 = vunpack.c.0.s8 %v357
      %v359 = vlaneseq
      %v360 = vshrl.u32 %v359, 7
      %v361 = vsub.s32 %v358, %v360
      %v362 = vrot.slane %v348, %v361
      %v363 = vcombine.low %v355, %v362
      %v364 = vcombine.low %v199, %v208
      %v365 = vcombine.low %v217, %v226
      %v367 = vunpack.c.l.s4 1983009808
      %v368 = vunpack.c.0.s8 %v367
      %v369 = vlaneseq
      %v370 = vshrl.u32 %v369, 7
      %v371 = vsub.s32 %v368, %v370
      %v372 = vrot.slane %v364, %v371
      %v374 = vunpack.c.l.s4 1983009808
      %v375 = vunpack.c.0.s8 %v374
      %v376 = vlaneseq
      %v377 = vshrl.u32 %v376, 7
      %v378 = vsub.s32 %v375, %v377
      %v379 = vrot.slane %v365, %v378
      %v380 = vcombine.low %v372, %v379
      %381 = vrot.lane.b32.xlu0 %v363, 3
      %v382 = vpop.permute.xlu0 %381
      %383 = vrot.lane.b32.xlu0 %v380, 3
      %v384 = vpop.permute.xlu0 %383
      %v395 = vcombine.low %v164, %v173
      %v396 = vcombine.low %v182, %v191
      %v398 = vunpack.c.l.s4 1983009808
      %v399 = vunpack.c.0.s8 %v398
      %v400 = vlaneseq
      %v401 = vshrl.u32 %v400, 7
      %v402 = vsub.s32 %v399, %v401
      %v403 = vrot.slane %v395, %v402
      %v405 = vunpack.c.l.s4 1983009808
      %v406 = vunpack.c.0.s8 %v405
      %v407 = vlaneseq
      %v408 = vshrl.u32 %v407, 7
      %v409 = vsub.s32 %v406, %v408
      %v410 = vrot.slane %v396, %v409
      %v411 = vcombine.low %v403, %v410
      %v412 = vcombine.low %v200, %v209
      %v413 = vcombine.low %v218, %v227
      %v415 = vunpack.c.l.s4 1983009808
      %v416 = vunpack.c.0.s8 %v415
      %v417 = vlaneseq
      %v418 = vshrl.u32 %v417, 7
      %v419 = vsub.s32 %v416, %v418
      %v420 = vrot.slane %v412, %v419
      %v422 = vunpack.c.l.s4 1983009808
      %v423 = vunpack.c.0.s8 %v422
      %v424 = vlaneseq
      %v425 = vshrl.u32 %v424, 7
      %v426 = vsub.s32 %v423, %v425
      %v427 = vrot.slane %v413, %v426
      %v428 = vcombine.low %v420, %v427
      %429 = vrot.lane.b32.xlu0 %v411, 25
      %v430 = vpop.permute.xlu0 %429
      %431 = vrot.lane.b32.xlu0 %v428, 25
      %v432 = vpop.permute.xlu0 %431
      %vm435 = vcmask 23552
      %v436 = vsel %vm435, 0.0, %v382
      %v437 = vsel %vm435, 0.0, %v384
      %vm438 = vcmask 154624
      %v439 = vsel %vm438, %v436, 0.0
      %v440 = vsel %vm438, %v437, 0.0
      %vm441 = vcmask 179200
      %v442 = vsel %vm441, %v439, 0.0
      %v443 = vsel %vm441, %v440, 0.0
      %vm444 = vcmask 203776
      %v445 = vsel %vm444, %v442, %v430
      %v446 = vsel %vm444, %v443, %v432
      %vm447 = vcmask 334848
      %v448 = vsel %vm447, %v445, 0.0
      %v449 = vsel %vm447, %v446, 0.0
      %v458 = vcombine.low %v274, %v283
      %v459 = vcombine.low %v292, %v301
      %v461 = vunpack.c.l.s4 1983009808
      %v462 = vunpack.c.0.s8 %v461
      %v463 = vlaneseq
      %v464 = vshrl.u32 %v463, 7
      %v465 = vsub.s32 %v462, %v464
      %v466 = vrot.slane %v458, %v465
      %v468 = vunpack.c.l.s4 1983009808
      %v469 = vunpack.c.0.s8 %v468
      %v470 = vlaneseq
      %v471 = vshrl.u32 %v470, 7
      %v472 = vsub.s32 %v469, %v471
      %v473 = vrot.slane %v459, %v472
      %v474 = vcombine.low %v466, %v473
      %v475 = vcombine.low %v310, %v319
      %v476 = vcombine.low %v328, %v337
      %v478 = vunpack.c.l.s4 1983009808
      %v479 = vunpack.c.0.s8 %v478
      %v480 = vlaneseq
      %v481 = vshrl.u32 %v480, 7
      %v482 = vsub.s32 %v479, %v481
      %v483 = vrot.slane %v475, %v482
      %v485 = vunpack.c.l.s4 1983009808
      %v486 = vunpack.c.0.s8 %v485
      %v487 = vlaneseq
      %v488 = vshrl.u32 %v487, 7
      %v489 = vsub.s32 %v486, %v488
      %v490 = vrot.slane %v476, %v489
      %v491 = vcombine.low %v483, %v490
      %492 = vrot.lane.b32.xlu0 %v474, 3
      %v493 = vpop.permute.xlu0 %492
      %494 = vrot.lane.b32.xlu0 %v491, 3
      %v495 = vpop.permute.xlu0 %494
      %v506 = vcombine.low %v275, %v284
      %v507 = vcombine.low %v293, %v302
      %v509 = vunpack.c.l.s4 1983009808
      %v510 = vunpack.c.0.s8 %v509
      %v511 = vlaneseq
      %v512 = vshrl.u32 %v511, 7
      %v513 = vsub.s32 %v510, %v512
      %v514 = vrot.slane %v506, %v513
      %v516 = vunpack.c.l.s4 1983009808
      %v517 = vunpack.c.0.s8 %v516
      %v518 = vlaneseq
      %v519 = vshrl.u32 %v518, 7
      %v520 = vsub.s32 %v517, %v519
      %v521 = vrot.slane %v507, %v520
      %v522 = vcombine.low %v514, %v521
      %v523 = vcombine.low %v311, %v320
      %v524 = vcombine.low %v329, %v338
      %v526 = vunpack.c.l.s4 1983009808
      %v527 = vunpack.c.0.s8 %v526
      %v528 = vlaneseq
      %v529 = vshrl.u32 %v528, 7
      %v530 = vsub.s32 %v527, %v529
      %v531 = vrot.slane %v523, %v530
      %v533 = vunpack.c.l.s4 1983009808
      %v534 = vunpack.c.0.s8 %v533
      %v535 = vlaneseq
      %v536 = vshrl.u32 %v535, 7
      %v537 = vsub.s32 %v534, %v536
      %v538 = vrot.slane %v524, %v537
      %v539 = vcombine.low %v531, %v538
      %540 = vrot.lane.b32.xlu0 %v522, 25
      %v541 = vpop.permute.xlu0 %540
      %542 = vrot.lane.b32.xlu0 %v539, 25
      %v543 = vpop.permute.xlu0 %542
      %v546 = vsel %vm435, 0.0, %v493
      %v547 = vsel %vm435, 0.0, %v495
      %v548 = vsel %vm438, %v546, 0.0
      %v549 = vsel %vm438, %v547, 0.0
      %v550 = vsel %vm441, %v548, 0.0
      %v551 = vsel %vm441, %v549, 0.0
      %v552 = vsel %vm444, %v550, %v541
      %v553 = vsel %vm444, %v551, %v543
      %v554 = vsel %vm447, %v552, 0.0
      %v555 = vsel %vm447, %v553, 0.0
      %vm558 = vcmask 1042432
      %v559 = vrot.slane %v448, 5
      %v560 = vrot.slane %v449, 5
      %v561 = vsel %vm558, %v559, %v560
      %v565 = vsel %vm558, 0.0, %v559
      %v566 = vsel %vm558, %v560, 0.0
      %vm567 = vcmask 359424
      %568 = vst.msk [vmem:[#allocation4] sm:$0xff] %vm567, %v565
      %569 = vst.msk [vmem:[#allocation4 + $0x8] sm:$0xff] %vm567, %v561
      %vm570 = vcmask 357376
      %571 = vst.msk [vmem:[#allocation4 + $0x10] sm:$0x3f] %vm570, %v566
      %v574 = vrot.slane %v554, 5
      %v575 = vrot.slane %v555, 5
      %v576 = vsel %vm558, %v574, %v575
      %v580 = vsel %vm558, 0.0, %v574
      %v581 = vsel %vm558, %v575, 0.0
      %582 = vst.msk [vmem:[#allocation5] sm:$0xff] %vm567, %v580
      %583 = vst.msk [vmem:[#allocation5 + $0x8] sm:$0xff] %vm567, %v576
      %584 = vst.msk [vmem:[#allocation5 + $0x10] sm:$0x3f] %vm570, %v581
      %v585 = vld [vmem:[#allocation4] sm:$0xff]
      %v586 = vld [vmem:[#allocation4 + $0x8] sm:$0xff]
      %v587 = vld [vmem:[#allocation4 + $0x10] sm:$0x3f]
      %v588 = vld [vmem:[#allocation5] sm:$0xff]
      %v589 = vld [vmem:[#allocation5 + $0x8] sm:$0xff]
      %v590 = vld [vmem:[#allocation5 + $0x10] sm:$0x3f]
      %s591 = sld [smem:[#allocation6]]
      %s592 = sld [smem:[#allocation6 + $0x31]]
      %v593 = vstv %s591
      %v594 = vmul.f32 %v593, %v585
      %v595 = vmul.f32 %v593, %v586
      %v596 = vadd.f32 %v594, 0.0
      %v597 = vadd.f32 %v595, 0.0
      %v598 = vstv %s592
      %v599 = vmul.f32 %v598, %v588
      %v600 = vmul.f32 %v598, %v589
      %v601 = vadd.f32 %v596, %v599
      %v602 = vadd.f32 %v597, %v600
      %s603 = sld [smem:[#allocation6 + $0x7]]
      %s604 = sld [smem:[#allocation6 + $0x38]]
      %v605 = vstv %s603
      %v606 = vmul.f32 %v605, %v585
      %v607 = vmul.f32 %v605, %v586
      %v608 = vmul.f32 %v605, %v587
      %vm612 = vcmask 1046528
      %v613 = vrot.slane %v606, 1
      %v614 = vrot.slane %v607, 1
      %v615 = vsel %vm612, %v613, %v614
      %v616 = vrot.slane %v608, 1
      %v617 = vsel %vm612, %v614, %v616
      %v620 = vadd.f32 %v601, %v615
      %v621 = vadd.f32 %v602, %v617
      %v622 = vstv %s604
      %v623 = vmul.f32 %v622, %v588
      %v624 = vmul.f32 %v622, %v589
      %v625 = vmul.f32 %v622, %v590
      %v629 = vrot.slane %v623, 1
      %v630 = vrot.slane %v624, 1
      %v631 = vsel %vm612, %v629, %v630
      %v632 = vrot.slane %v625, 1
      %v633 = vsel %vm612, %v630, %v632
      %v636 = vadd.f32 %v620, %v631
      %v637 = vadd.f32 %v621, %v633
      %s638 = sld [smem:[#allocation6 + $0xe]]
      %s639 = sld [smem:[#allocation6 + $0x3f]]
      %v640 = vstv %s638
      %v641 = vmul.f32 %v640, %v585
      %v642 = vmul.f32 %v640, %v586
      %v643 = vmul.f32 %v640, %v587
      %vm647 = vcmask 1045504
      %v648 = vrot.slane %v641, 2
      %v649 = vrot.slane %v642, 2
      %v650 = vsel %vm647, %v648, %v649
      %v651 = vrot.slane %v643, 2
      %v652 = vsel %vm647, %v649, %v651
      %v655 = vadd.f32 %v636, %v650
      %v656 = vadd.f32 %v637, %v652
      %v657 = vstv %s639
      %v658 = vmul.f32 %v657, %v588
      %v659 = vmul.f32 %v657, %v589
      %v660 = vmul.f32 %v657, %v590
      %v664 = vrot.slane %v658, 2
      %v665 = vrot.slane %v659, 2
      %v666 = vsel %vm647, %v664, %v665
      %v667 = vrot.slane %v660, 2
      %v668 = vsel %vm647, %v665, %v667
      %v671 = vadd.f32 %v655, %v666
      %v672 = vadd.f32 %v656, %v668
      %s673 = sld [smem:[#allocation6 + $0x15]]
      %s674 = sld [smem:[#allocation6 + $0x46]]
      %v675 = vstv %s673
      %v676 = vmul.f32 %v675, %v585
      %v677 = vmul.f32 %v675, %v586
      %v678 = vmul.f32 %v675, %v587
      %vm682 = vcmask 1044480
      %v683 = vrot.slane %v676, 3
      %v684 = vrot.slane %v677, 3
      %v685 = vsel %vm682, %v683, %v684
      %v686 = vrot.slane %v678, 3
      %v687 = vsel %vm682, %v684, %v686
      %v690 = vadd.f32 %v671, %v685
      %v691 = vadd.f32 %v672, %v687
      %v692 = vstv %s674
      %v693 = vmul.f32 %v692, %v588
      %v694 = vmul.f32 %v692, %v589
      %v695 = vmul.f32 %v692, %v590
      %v699 = vrot.slane %v693, 3
      %v700 = vrot.slane %v694, 3
      %v701 = vsel %vm682, %v699, %v700
      %v702 = vrot.slane %v695, 3
      %v703 = vsel %vm682, %v700, %v702
      %v706 = vadd.f32 %v690, %v701
      %v707 = vadd.f32 %v691, %v703
      %s708 = sld [smem:[#allocation6 + $0x1c]]
      %s709 = sld [smem:[#allocation6 + $0x4d]]
      %v710 = vstv %s708
      %v711 = vmul.f32 %v710, %v585
      %v712 = vmul.f32 %v710, %v586
      %v713 = vmul.f32 %v710, %v587
      %vm717 = vcmask 1043456
      %v718 = vrot.slane %v711, 4
      %v719 = vrot.slane %v712, 4
      %v720 = vsel %vm717, %v718, %v719
      %v721 = vrot.slane %v713, 4
      %v722 = vsel %vm717, %v719, %v721
      %v725 = vadd.f32 %v706, %v720
      %v726 = vadd.f32 %v707, %v722
      %v727 = vstv %s709
      %v728 = vmul.f32 %v727, %v588
      %v729 = vmul.f32 %v727, %v589
      %v730 = vmul.f32 %v727, %v590
      %v734 = vrot.slane %v728, 4
      %v735 = vrot.slane %v729, 4
      %v736 = vsel %vm717, %v734, %v735
      %v737 = vrot.slane %v730, 4
      %v738 = vsel %vm717, %v735, %v737
      %v741 = vadd.f32 %v725, %v736
      %v742 = vadd.f32 %v726, %v738
      %s743 = sld [smem:[#allocation6 + $0x23]]
      %s744 = sld [smem:[#allocation6 + $0x54]]
      %v745 = vstv %s743
      %v746 = vmul.f32 %v745, %v585
      %v747 = vmul.f32 %v745, %v586
      %v748 = vmul.f32 %v745, %v587
      %v752 = vrot.slane %v746, 5
      %v753 = vrot.slane %v747, 5
      %v754 = vsel %vm558, %v752, %v753
      %v755 = vrot.slane %v748, 5
      %v756 = vsel %vm558, %v753, %v755
      %v759 = vadd.f32 %v741, %v754
      %v760 = vadd.f32 %v742, %v756
      %v761 = vstv %s744
      %v762 = vmul.f32 %v761, %v588
      %v763 = vmul.f32 %v761, %v589
      %v764 = vmul.f32 %v761, %v590
      %v768 = vrot.slane %v762, 5
      %v769 = vrot.slane %v763, 5
      %v770 = vsel %vm558, %v768, %v769
      %v771 = vrot.slane %v764, 5
      %v772 = vsel %vm558, %v769, %v771
      %v775 = vadd.f32 %v759, %v770
      %v776 = vadd.f32 %v760, %v772
      %s777 = sld [smem:[#allocation6 + $0x2a]]
      %s778 = sld [smem:[#allocation6 + $0x5b]]
      %v779 = vstv %s777
      %v780 = vmul.f32 %v779, %v585
      %v781 = vmul.f32 %v779, %v586
      %v782 = vmul.f32 %v779, %v587
      %vm786 = vcmask 1041408
      %v787 = vrot.slane %v780, 6
      %v788 = vrot.slane %v781, 6
      %v789 = vsel %vm786, %v787, %v788
      %v790 = vrot.slane %v782, 6
      %v791 = vsel %vm786, %v788, %v790
      %v794 = vadd.f32 %v775, %v789
      %v795 = vadd.f32 %v776, %v791
      %v796 = vstv %s778
      %v797 = vmul.f32 %v796, %v588
      %v798 = vmul.f32 %v796, %v589
      %v799 = vmul.f32 %v796, %v590
      %v803 = vrot.slane %v797, 6
      %v804 = vrot.slane %v798, 6
      %v805 = vsel %vm786, %v803, %v804
      %v806 = vrot.slane %v799, 6
      %v807 = vsel %vm786, %v804, %v806
      %v810 = vadd.f32 %v794, %v805
      %v811 = vadd.f32 %v795, %v807
      %s812 = sld [smem:[#allocation6 + $0x1]]
      %s813 = sld [smem:[#allocation6 + $0x32]]
      %v814 = vstv %s812
      %v815 = vmul.f32 %v814, %v585
      %v816 = vmul.f32 %v814, %v586
      %819 = vrot.lane.b32.xlu0 %v815, 127
      %v820 = vpop.permute.xlu0 %819
      %821 = vrot.lane.b32.xlu0 %v816, 127
      %v822 = vpop.permute.xlu0 %821
      %v825 = vadd.f32 %v810, %v820
      %v826 = vadd.f32 %v811, %v822
      %v827 = vstv %s813
      %v828 = vmul.f32 %v827, %v588
      %v829 = vmul.f32 %v827, %v589
      %832 = vrot.lane.b32.xlu0 %v828, 127
      %v833 = vpop.permute.xlu0 %832
      %834 = vrot.lane.b32.xlu0 %v829, 127
      %v835 = vpop.permute.xlu0 %834
      %v838 = vadd.f32 %v825, %v833
      %v839 = vadd.f32 %v826, %v835
      %s840 = sld [smem:[#allocation6 + $0x8]]
      %s841 = sld [smem:[#allocation6 + $0x39]]
      %v842 = vstv %s840
      %v843 = vmul.f32 %v842, %v585
      %v844 = vmul.f32 %v842, %v586
      %v845 = vmul.f32 %v842, %v587
      %v849 = vrot.slane %v843, 1
      %v850 = vrot.slane %v844, 1
      %v851 = vsel %vm612, %v849, %v850
      %v852 = vrot.slane %v845, 1
      %v853 = vsel %vm612, %v850, %v852
      %854 = vrot.lane.b32.xlu0 %v851, 127
      %v855 = vpop.permute.xlu0 %854
      %856 = vrot.lane.b32.xlu0 %v853, 127
      %v857 = vpop.permute.xlu0 %856
      %v860 = vadd.f32 %v838, %v855
      %v861 = vadd.f32 %v839, %v857
      %v862 = vstv %s841
      %v863 = vmul.f32 %v862, %v588
      %v864 = vmul.f32 %v862, %v589
      %v865 = vmul.f32 %v862, %v590
      %v869 = vrot.slane %v863, 1
      %v870 = vrot.slane %v864, 1
      %v871 = vsel %vm612, %v869, %v870
      %v872 = vrot.slane %v865, 1
      %v873 = vsel %vm612, %v870, %v872
      %874 = vrot.lane.b32.xlu0 %v871, 127
      %v875 = vpop.permute.xlu0 %874
      %876 = vrot.lane.b32.xlu0 %v873, 127
      %v877 = vpop.permute.xlu0 %876
      %v880 = vadd.f32 %v860, %v875
      %v881 = vadd.f32 %v861, %v877
      %s882 = sld [smem:[#allocation6 + $0xf]]
      %s883 = sld [smem:[#allocation6 + $0x40]]
      %v884 = vstv %s882
      %v885 = vmul.f32 %v884, %v585
      %v886 = vmul.f32 %v884, %v586
      %v887 = vmul.f32 %v884, %v587
      %v891 = vrot.slane %v885, 2
      %v892 = vrot.slane %v886, 2
      %v893 = vsel %vm647, %v891, %v892
      %v894 = vrot.slane %v887, 2
      %v895 = vsel %vm647, %v892, %v894
      %896 = vrot.lane.b32.xlu0 %v893, 127
      %v897 = vpop.permute.xlu0 %896
      %898 = vrot.lane.b32.xlu0 %v895, 127
      %v899 = vpop.permute.xlu0 %898
      %v902 = vadd.f32 %v880, %v897
      %v903 = vadd.f32 %v881, %v899
      %v904 = vstv %s883
      %v905 = vmul.f32 %v904, %v588
      %v906 = vmul.f32 %v904, %v589
      %v907 = vmul.f32 %v904, %v590
      %v911 = vrot.slane %v905, 2
      %v912 = vrot.slane %v906, 2
      %v913 = vsel %vm647, %v911, %v912
      %v914 = vrot.slane %v907, 2
      %v915 = vsel %vm647, %v912, %v914
      %916 = vrot.lane.b32.xlu0 %v913, 127
      %v917 = vpop.permute.xlu0 %916
      %918 = vrot.lane.b32.xlu0 %v915, 127
      %v919 = vpop.permute.xlu0 %918
      %v922 = vadd.f32 %v902, %v917
      %v923 = vadd.f32 %v903, %v919
      %s924 = sld [smem:[#allocation6 + $0x16]]
      %s925 = sld [smem:[#allocation6 + $0x47]]
      %v926 = vstv %s924
      %v927 = vmul.f32 %v926, %v585
      %v928 = vmul.f32 %v926, %v586
      %v929 = vmul.f32 %v926, %v587
      %v933 = vrot.slane %v927, 3
      %v934 = vrot.slane %v928, 3
      %v935 = vsel %vm682, %v933, %v934
      %v936 = vrot.slane %v929, 3
      %v937 = vsel %vm682, %v934, %v936
      %938 = vrot.lane.b32.xlu0 %v935, 127
      %v939 = vpop.permute.xlu0 %938
      %940 = vrot.lane.b32.xlu0 %v937, 127
      %v941 = vpop.permute.xlu0 %940
      %v944 = vadd.f32 %v922, %v939
      %v945 = vadd.f32 %v923, %v941
      %v946 = vstv %s925
      %v947 = vmul.f32 %v946, %v588
      %v948 = vmul.f32 %v946, %v589
      %v949 = vmul.f32 %v946, %v590
      %v953 = vrot.slane %v947, 3
      %v954 = vrot.slane %v948, 3
      %v955 = vsel %vm682, %v953, %v954
      %v956 = vrot.slane %v949, 3
      %v957 = vsel %vm682, %v954, %v956
      %958 = vrot.lane.b32.xlu0 %v955, 127
      %v959 = vpop.permute.xlu0 %958
      %960 = vrot.lane.b32.xlu0 %v957, 127
      %v961 = vpop.permute.xlu0 %960
      %v964 = vadd.f32 %v944, %v959
      %v965 = vadd.f32 %v945, %v961
      %s966 = sld [smem:[#allocation6 + $0x1d]]
      %s967 = sld [smem:[#allocation6 + $0x4e]]
      %v968 = vstv %s966
      %v969 = vmul.f32 %v968, %v585
      %v970 = vmul.f32 %v968, %v586
      %v971 = vmul.f32 %v968, %v587
      %v975 = vrot.slane %v969, 4
      %v976 = vrot.slane %v970, 4
      %v977 = vsel %vm717, %v975, %v976
      %v978 = vrot.slane %v971, 4
      %v979 = vsel %vm717, %v976, %v978
      %980 = vrot.lane.b32.xlu0 %v977, 127
      %v981 = vpop.permute.xlu0 %980
      %982 = vrot.lane.b32.xlu0 %v979, 127
      %v983 = vpop.permute.xlu0 %982
      %v986 = vadd.f32 %v964, %v981
      %v987 = vadd.f32 %v965, %v983
      %v988 = vstv %s967
      %v989 = vmul.f32 %v988, %v588
      %v990 = vmul.f32 %v988, %v589
      %v991 = vmul.f32 %v988, %v590
      %v995 = vrot.slane %v989, 4
      %v996 = vrot.slane %v990, 4
      %v997 = vsel %vm717, %v995, %v996
      %v998 = vrot.slane %v991, 4
      %v999 = vsel %vm717, %v996, %v998
      %1000 = vrot.lane.b32.xlu0 %v997, 127
      %v1001 = vpop.permute.xlu0 %1000
      %1002 = vrot.lane.b32.xlu0 %v999, 127
      %v1003 = vpop.permute.xlu0 %1002
      %v1006 = vadd.f32 %v986, %v1001
      %v1007 = vadd.f32 %v987, %v1003
      %s1008 = sld [smem:[#allocation6 + $0x24]]
      %s1009 = sld [smem:[#allocation6 + $0x55]]
      %v1010 = vstv %s1008
      %v1011 = vmul.f32 %v1010, %v585
      %v1012 = vmul.f32 %v1010, %v586
      %v1013 = vmul.f32 %v1010, %v587
      %v1017 = vrot.slane %v1011, 5
      %v1018 = vrot.slane %v1012, 5
      %v1019 = vsel %vm558, %v1017, %v1018
      %v1020 = vrot.slane %v1013, 5
      %v1021 = vsel %vm558, %v1018, %v1020
      %1022 = vrot.lane.b32.xlu0 %v1019, 127
      %v1023 = vpop.permute.xlu0 %1022
      %1024 = vrot.lane.b32.xlu0 %v1021, 127
      %v1025 = vpop.permute.xlu0 %1024
      %v1028 = vadd.f32 %v1006, %v1023
      %v1029 = vadd.f32 %v1007, %v1025
      %v1030 = vstv %s1009
      %v1031 = vmul.f32 %v1030, %v588
      %v1032 = vmul.f32 %v1030, %v589
      %v1033 = vmul.f32 %v1030, %v590
      %v1037 = vrot.slane %v1031, 5
      %v1038 = vrot.slane %v1032, 5
      %v1039 = vsel %vm558, %v1037, %v1038
      %v1040 = vrot.slane %v1033, 5
      %v1041 = vsel %vm558, %v1038, %v1040
      %1042 = vrot.lane.b32.xlu0 %v1039, 127
      %v1043 = vpop.permute.xlu0 %1042
      %1044 = vrot.lane.b32.xlu0 %v1041, 127
      %v1045 = vpop.permute.xlu0 %1044
      %v1048 = vadd.f32 %v1028, %v1043
      %v1049 = vadd.f32 %v1029, %v1045
      %s1050 = sld [smem:[#allocation6 + $0x2b]]
      %s1051 = sld [smem:[#allocation6 + $0x5c]]
      %v1052 = vstv %s1050
      %v1053 = vmul.f32 %v1052, %v585
      %v1054 = vmul.f32 %v1052, %v586
      %v1055 = vmul.f32 %v1052, %v587
      %v1059 = vrot.slane %v1053, 6
      %v1060 = vrot.slane %v1054, 6
      %v1061 = vsel %vm786, %v1059, %v1060
      %v1062 = vrot.slane %v1055, 6
      %v1063 = vsel %vm786, %v1060, %v1062
      %1064 = vrot.lane.b32.xlu0 %v1061, 127
      %v1065 = vpop.permute.xlu0 %1064
      %1066 = vrot.lane.b32.xlu0 %v1063, 127
      %v1067 = vpop.permute.xlu0 %1066
      %v1070 = vadd.f32 %v1048, %v1065
      %v1071 = vadd.f32 %v1049, %v1067
      %v1072 = vstv %s1051
      %v1073 = vmul.f32 %v1072, %v588
      %v1074 = vmul.f32 %v1072, %v589
      %v1075 = vmul.f32 %v1072, %v590
      %v1079 = vrot.slane %v1073, 6
      %v1080 = vrot.slane %v1074, 6
      %v1081 = vsel %vm786, %v1079, %v1080
      %v1082 = vrot.slane %v1075, 6
      %v1083 = vsel %vm786, %v1080, %v1082
      %1084 = vrot.lane.b32.xlu0 %v1081, 127
      %v1085 = vpop.permute.xlu0 %1084
      %1086 = vrot.lane.b32.xlu0 %v1083, 127
      %v1087 = vpop.permute.xlu0 %1086
      %v1090 = vadd.f32 %v1070, %v1085
      %v1091 = vadd.f32 %v1071, %v1087
      %s1092 = sld [smem:[#allocation6 + $0x2]]
      %s1093 = sld [smem:[#allocation6 + $0x33]]
      %v1094 = vstv %s1092
      %v1095 = vmul.f32 %v1094, %v585
      %v1096 = vmul.f32 %v1094, %v586
      %1099 = vrot.lane.b32.xlu0 %v1095, 126
      %v1100 = vpop.permute.xlu0 %1099
      %1101 = vrot.lane.b32.xlu0 %v1096, 126
      %v1102 = vpop.permute.xlu0 %1101
      %v1105 = vadd.f32 %v1090, %v1100
      %v1106 = vadd.f32 %v1091, %v1102
      %v1107 = vstv %s1093
      %v1108 = vmul.f32 %v1107, %v588
      %v1109 = vmul.f32 %v1107, %v589
      %1112 = vrot.lane.b32.xlu0 %v1108, 126
      %v1113 = vpop.permute.xlu0 %1112
      %1114 = vrot.lane.b32.xlu0 %v1109, 126
      %v1115 = vpop.permute.xlu0 %1114
      %v1118 = vadd.f32 %v1105, %v1113
      %v1119 = vadd.f32 %v1106, %v1115
      %s1120 = sld [smem:[#allocation6 + $0x9]]
      %s1121 = sld [smem:[#allocation6 + $0x3a]]
      %v1122 = vstv %s1120
      %v1123 = vmul.f32 %v1122, %v585
      %v1124 = vmul.f32 %v1122, %v586
      %v1125 = vmul.f32 %v1122, %v587
      %v1129 = vrot.slane %v1123, 1
      %v1130 = vrot.slane %v1124, 1
      %v1131 = vsel %vm612, %v1129, %v1130
      %v1132 = vrot.slane %v1125, 1
      %v1133 = vsel %vm612, %v1130, %v1132
      %1134 = vrot.lane.b32.xlu0 %v1131, 126
      %v1135 = vpop.permute.xlu0 %1134
      %1136 = vrot.lane.b32.xlu0 %v1133, 126
      %v1137 = vpop.permute.xlu0 %1136
      %v1140 = vadd.f32 %v1118, %v1135
      %v1141 = vadd.f32 %v1119, %v1137
      %v1142 = vstv %s1121
      %v1143 = vmul.f32 %v1142, %v588
      %v1144 = vmul.f32 %v1142, %v589
      %v1145 = vmul.f32 %v1142, %v590
      %v1149 = vrot.slane %v1143, 1
      %v1150 = vrot.slane %v1144, 1
      %v1151 = vsel %vm612, %v1149, %v1150
      %v1152 = vrot.slane %v1145, 1
      %v1153 = vsel %vm612, %v1150, %v1152
      %1154 = vrot.lane.b32.xlu0 %v1151, 126
      %v1155 = vpop.permute.xlu0 %1154
      %1156 = vrot.lane.b32.xlu0 %v1153, 126
      %v1157 = vpop.permute.xlu0 %1156
      %v1160 = vadd.f32 %v1140, %v1155
      %v1161 = vadd.f32 %v1141, %v1157
      %s1162 = sld [smem:[#allocation6 + $0x10]]
      %s1163 = sld [smem:[#allocation6 + $0x41]]
      %v1164 = vstv %s1162
      %v1165 = vmul.f32 %v1164, %v585
      %v1166 = vmul.f32 %v1164, %v586
      %v1167 = vmul.f32 %v1164, %v587
      %v1171 = vrot.slane %v1165, 2
      %v1172 = vrot.slane %v1166, 2
      %v1173 = vsel %vm647, %v1171, %v1172
      %v1174 = vrot.slane %v1167, 2
      %v1175 = vsel %vm647, %v1172, %v1174
      %1176 = vrot.lane.b32.xlu0 %v1173, 126
      %v1177 = vpop.permute.xlu0 %1176
      %1178 = vrot.lane.b32.xlu0 %v1175, 126
      %v1179 = vpop.permute.xlu0 %1178
      %v1182 = vadd.f32 %v1160, %v1177
      %v1183 = vadd.f32 %v1161, %v1179
      %v1184 = vstv %s1163
      %v1185 = vmul.f32 %v1184, %v588
      %v1186 = vmul.f32 %v1184, %v589
      %v1187 = vmul.f32 %v1184, %v590
      %v1191 = vrot.slane %v1185, 2
      %v1192 = vrot.slane %v1186, 2
      %v1193 = vsel %vm647, %v1191, %v1192
      %v1194 = vrot.slane %v1187, 2
      %v1195 = vsel %vm647, %v1192, %v1194
      %1196 = vrot.lane.b32.xlu0 %v1193, 126
      %v1197 = vpop.permute.xlu0 %1196
      %1198 = vrot.lane.b32.xlu0 %v1195, 126
      %v1199 = vpop.permute.xlu0 %1198
      %v1202 = vadd.f32 %v1182, %v1197
      %v1203 = vadd.f32 %v1183, %v1199
      %s1204 = sld [smem:[#allocation6 + $0x17]]
      %s1205 = sld [smem:[#allocation6 + $0x48]]
      %v1206 = vstv %s1204
      %v1207 = vmul.f32 %v1206, %v585
      %v1208 = vmul.f32 %v1206, %v586
      %v1209 = vmul.f32 %v1206, %v587
      %v1213 = vrot.slane %v1207, 3
      %v1214 = vrot.slane %v1208, 3
      %v1215 = vsel %vm682, %v1213, %v1214
      %v1216 = vrot.slane %v1209, 3
      %v1217 = vsel %vm682, %v1214, %v1216
      %1218 = vrot.lane.b32.xlu0 %v1215, 126
      %v1219 = vpop.permute.xlu0 %1218
      %1220 = vrot.lane.b32.xlu0 %v1217, 126
      %v1221 = vpop.permute.xlu0 %1220
      %v1224 = vadd.f32 %v1202, %v1219
      %v1225 = vadd.f32 %v1203, %v1221
      %v1226 = vstv %s1205
      %v1227 = vmul.f32 %v1226, %v588
      %v1228 = vmul.f32 %v1226, %v589
      %v1229 = vmul.f32 %v1226, %v590
      %v1233 = vrot.slane %v1227, 3
      %v1234 = vrot.slane %v1228, 3
      %v1235 = vsel %vm682, %v1233, %v1234
      %v1236 = vrot.slane %v1229, 3
      %v1237 = vsel %vm682, %v1234, %v1236
      %1238 = vrot.lane.b32.xlu0 %v1235, 126
      %v1239 = vpop.permute.xlu0 %1238
      %1240 = vrot.lane.b32.xlu0 %v1237, 126
      %v1241 = vpop.permute.xlu0 %1240
      %v1244 = vadd.f32 %v1224, %v1239
      %v1245 = vadd.f32 %v1225, %v1241
      %s1246 = sld [smem:[#allocation6 + $0x1e]]
      %s1247 = sld [smem:[#allocation6 + $0x4f]]
      %v1248 = vstv %s1246
      %v1249 = vmul.f32 %v1248, %v585
      %v1250 = vmul.f32 %v1248, %v586
      %v1251 = vmul.f32 %v1248, %v587
      %v1255 = vrot.slane %v1249, 4
      %v1256 = vrot.slane %v1250, 4
      %v1257 = vsel %vm717, %v1255, %v1256
      %v1258 = vrot.slane %v1251, 4
      %v1259 = vsel %vm717, %v1256, %v1258
      %1260 = vrot.lane.b32.xlu0 %v1257, 126
      %v1261 = vpop.permute.xlu0 %1260
      %1262 = vrot.lane.b32.xlu0 %v1259, 126
      %v1263 = vpop.permute.xlu0 %1262
      %v1266 = vadd.f32 %v1244, %v1261
      %v1267 = vadd.f32 %v1245, %v1263
      %v1268 = vstv %s1247
      %v1269 = vmul.f32 %v1268, %v588
      %v1270 = vmul.f32 %v1268, %v589
      %v1271 = vmul.f32 %v1268, %v590
      %v1275 = vrot.slane %v1269, 4
      %v1276 = vrot.slane %v1270, 4
      %v1277 = vsel %vm717, %v1275, %v1276
      %v1278 = vrot.slane %v1271, 4
      %v1279 = vsel %vm717, %v1276, %v1278
      %1280 = vrot.lane.b32.xlu0 %v1277, 126
      %v1281 = vpop.permute.xlu0 %1280
      %1282 = vrot.lane.b32.xlu0 %v1279, 126
      %v1283 = vpop.permute.xlu0 %1282
      %v1286 = vadd.f32 %v1266, %v1281
      %v1287 = vadd.f32 %v1267, %v1283
      %s1288 = sld [smem:[#allocation6 + $0x25]]
      %s1289 = sld [smem:[#allocation6 + $0x56]]
      %v1290 = vstv %s1288
      %v1291 = vmul.f32 %v1290, %v585
      %v1292 = vmul.f32 %v1290, %v586
      %v1293 = vmul.f32 %v1290, %v587
      %v1297 = vrot.slane %v1291, 5
      %v1298 = vrot.slane %v1292, 5
      %v1299 = vsel %vm558, %v1297, %v1298
      %v1300 = vrot.slane %v1293, 5
      %v1301 = vsel %vm558, %v1298, %v1300
      %1302 = vrot.lane.b32.xlu0 %v1299, 126
      %v1303 = vpop.permute.xlu0 %1302
      %1304 = vrot.lane.b32.xlu0 %v1301, 126
      %v1305 = vpop.permute.xlu0 %1304
      %v1308 = vadd.f32 %v1286, %v1303
      %v1309 = vadd.f32 %v1287, %v1305
      %v1310 = vstv %s1289
      %v1311 = vmul.f32 %v1310, %v588
      %v1312 = vmul.f32 %v1310, %v589
      %v1313 = vmul.f32 %v1310, %v590
      %v1317 = vrot.slane %v1311, 5
      %v1318 = vrot.slane %v1312, 5
      %v1319 = vsel %vm558, %v1317, %v1318
      %v1320 = vrot.slane %v1313, 5
      %v1321 = vsel %vm558, %v1318, %v1320
      %1322 = vrot.lane.b32.xlu0 %v1319, 126
      %v1323 = vpop.permute.xlu0 %1322
      %1324 = vrot.lane.b32.xlu0 %v1321, 126
      %v1325 = vpop.permute.xlu0 %1324
      %v1328 = vadd.f32 %v1308, %v1323
      %v1329 = vadd.f32 %v1309, %v1325
      %s1330 = sld [smem:[#allocation6 + $0x2c]]
      %s1331 = sld [smem:[#allocation6 + $0x5d]]
      %v1332 = vstv %s1330
      %v1333 = vmul.f32 %v1332, %v585
      %v1334 = vmul.f32 %v1332, %v586
      %v1335 = vmul.f32 %v1332, %v587
      %v1339 = vrot.slane %v1333, 6
      %v1340 = vrot.slane %v1334, 6
      %v1341 = vsel %vm786, %v1339, %v1340
      %v1342 = vrot.slane %v1335, 6
      %v1343 = vsel %vm786, %v1340, %v1342
      %1344 = vrot.lane.b32.xlu0 %v1341, 126
      %v1345 = vpop.permute.xlu0 %1344
      %1346 = vrot.lane.b32.xlu0 %v1343, 126
      %v1347 = vpop.permute.xlu0 %1346
      %v1350 = vadd.f32 %v1328, %v1345
      %v1351 = vadd.f32 %v1329, %v1347
      %v1352 = vstv %s1331
      %v1353 = vmul.f32 %v1352, %v588
      %v1354 = vmul.f32 %v1352, %v589
      %v1355 = vmul.f32 %v1352, %v590
      %v1359 = vrot.slane %v1353, 6
      %v1360 = vrot.slane %v1354, 6
      %v1361 = vsel %vm786, %v1359, %v1360
      %v1362 = vrot.slane %v1355, 6
      %v1363 = vsel %vm786, %v1360, %v1362
      %1364 = vrot.lane.b32.xlu0 %v1361, 126
      %v1365 = vpop.permute.xlu0 %1364
      %1366 = vrot.lane.b32.xlu0 %v1363, 126
      %v1367 = vpop.permute.xlu0 %1366
      %v1370 = vadd.f32 %v1350, %v1365
      %v1371 = vadd.f32 %v1351, %v1367
      %s1372 = sld [smem:[#allocation6 + $0x3]]
      %s1373 = sld [smem:[#allocation6 + $0x34]]
      %v1374 = vstv %s1372
      %v1375 = vmul.f32 %v1374, %v585
      %v1376 = vmul.f32 %v1374, %v586
      %1379 = vrot.lane.b32.xlu0 %v1375, 125
      %v1380 = vpop.permute.xlu0 %1379
      %1381 = vrot.lane.b32.xlu0 %v1376, 125
      %v1382 = vpop.permute.xlu0 %1381
      %v1385 = vadd.f32 %v1370, %v1380
      %v1386 = vadd.f32 %v1371, %v1382
      %v1387 = vstv %s1373
      %v1388 = vmul.f32 %v1387, %v588
      %v1389 = vmul.f32 %v1387, %v589
      %1392 = vrot.lane.b32.xlu0 %v1388, 125
      %v1393 = vpop.permute.xlu0 %1392
      %1394 = vrot.lane.b32.xlu0 %v1389, 125
      %v1395 = vpop.permute.xlu0 %1394
      %v1398 = vadd.f32 %v1385, %v1393
      %v1399 = vadd.f32 %v1386, %v1395
      %s1400 = sld [smem:[#allocation6 + $0xa]]
      %s1401 = sld [smem:[#allocation6 + $0x3b]]
      %v1402 = vstv %s1400
      %v1403 = vmul.f32 %v1402, %v585
      %v1404 = vmul.f32 %v1402, %v586
      %v1405 = vmul.f32 %v1402, %v587
      %v1409 = vrot.slane %v1403, 1
      %v1410 = vrot.slane %v1404, 1
      %v1411 = vsel %vm612, %v1409, %v1410
      %v1412 = vrot.slane %v1405, 1
      %v1413 = vsel %vm612, %v1410, %v1412
      %1414 = vrot.lane.b32.xlu0 %v1411, 125
      %v1415 = vpop.permute.xlu0 %1414
      %1416 = vrot.lane.b32.xlu0 %v1413, 125
      %v1417 = vpop.permute.xlu0 %1416
      %v1420 = vadd.f32 %v1398, %v1415
      %v1421 = vadd.f32 %v1399, %v1417
      %v1422 = vstv %s1401
      %v1423 = vmul.f32 %v1422, %v588
      %v1424 = vmul.f32 %v1422, %v589
      %v1425 = vmul.f32 %v1422, %v590
      %v1429 = vrot.slane %v1423, 1
      %v1430 = vrot.slane %v1424, 1
      %v1431 = vsel %vm612, %v1429, %v1430
      %v1432 = vrot.slane %v1425, 1
      %v1433 = vsel %vm612, %v1430, %v1432
      %1434 = vrot.lane.b32.xlu0 %v1431, 125
      %v1435 = vpop.permute.xlu0 %1434
      %1436 = vrot.lane.b32.xlu0 %v1433, 125
      %v1437 = vpop.permute.xlu0 %1436
      %v1440 = vadd.f32 %v1420, %v1435
      %v1441 = vadd.f32 %v1421, %v1437
      %s1442 = sld [smem:[#allocation6 + $0x11]]
      %s1443 = sld [smem:[#allocation6 + $0x42]]
      %v1444 = vstv %s1442
      %v1445 = vmul.f32 %v1444, %v585
      %v1446 = vmul.f32 %v1444, %v586
      %v1447 = vmul.f32 %v1444, %v587
      %v1451 = vrot.slane %v1445, 2
      %v1452 = vrot.slane %v1446, 2
      %v1453 = vsel %vm647, %v1451, %v1452
      %v1454 = vrot.slane %v1447, 2
      %v1455 = vsel %vm647, %v1452, %v1454
      %1456 = vrot.lane.b32.xlu0 %v1453, 125
      %v1457 = vpop.permute.xlu0 %1456
      %1458 = vrot.lane.b32.xlu0 %v1455, 125
      %v1459 = vpop.permute.xlu0 %1458
      %v1462 = vadd.f32 %v1440, %v1457
      %v1463 = vadd.f32 %v1441, %v1459
      %v1464 = vstv %s1443
      %v1465 = vmul.f32 %v1464, %v588
      %v1466 = vmul.f32 %v1464, %v589
      %v1467 = vmul.f32 %v1464, %v590
      %v1471 = vrot.slane %v1465, 2
      %v1472 = vrot.slane %v1466, 2
      %v1473 = vsel %vm647, %v1471, %v1472
      %v1474 = vrot.slane %v1467, 2
      %v1475 = vsel %vm647, %v1472, %v1474
      %1476 = vrot.lane.b32.xlu0 %v1473, 125
      %v1477 = vpop.permute.xlu0 %1476
      %1478 = vrot.lane.b32.xlu0 %v1475, 125
      %v1479 = vpop.permute.xlu0 %1478
      %v1482 = vadd.f32 %v1462, %v1477
      %v1483 = vadd.f32 %v1463, %v1479
      %s1484 = sld [smem:[#allocation6 + $0x18]]
      %s1485 = sld [smem:[#allocation6 + $0x49]]
      %v1486 = vstv %s1484
      %v1487 = vmul.f32 %v1486, %v585
      %v1488 = vmul.f32 %v1486, %v586
      %v1489 = vmul.f32 %v1486, %v587
      %v1493 = vrot.slane %v1487, 3
      %v1494 = vrot.slane %v1488, 3
      %v1495 = vsel %vm682, %v1493, %v1494
      %v1496 = vrot.slane %v1489, 3
      %v1497 = vsel %vm682, %v1494, %v1496
      %1498 = vrot.lane.b32.xlu0 %v1495, 125
      %v1499 = vpop.permute.xlu0 %1498
      %1500 = vrot.lane.b32.xlu0 %v1497, 125
      %v1501 = vpop.permute.xlu0 %1500
      %v1504 = vadd.f32 %v1482, %v1499
      %v1505 = vadd.f32 %v1483, %v1501
      %v1506 = vstv %s1485
      %v1507 = vmul.f32 %v1506, %v588
      %v1508 = vmul.f32 %v1506, %v589
      %v1509 = vmul.f32 %v1506, %v590
      %v1513 = vrot.slane %v1507, 3
      %v1514 = vrot.slane %v1508, 3
      %v1515 = vsel %vm682, %v1513, %v1514
      %v1516 = vrot.slane %v1509, 3
      %v1517 = vsel %vm682, %v1514, %v1516
      %1518 = vrot.lane.b32.xlu0 %v1515, 125
      %v1519 = vpop.permute.xlu0 %1518
      %1520 = vrot.lane.b32.xlu0 %v1517, 125
      %v1521 = vpop.permute.xlu0 %1520
      %v1524 = vadd.f32 %v1504, %v1519
      %v1525 = vadd.f32 %v1505, %v1521
      %s1526 = sld [smem:[#allocation6 + $0x1f]]
      %s1527 = sld [smem:[#allocation6 + $0x50]]
      %v1528 = vstv %s1526
      %v1529 = vmul.f32 %v1528, %v585
      %v1530 = vmul.f32 %v1528, %v586
      %v1531 = vmul.f32 %v1528, %v587
      %v1535 = vrot.slane %v1529, 4
      %v1536 = vrot.slane %v1530, 4
      %v1537 = vsel %vm717, %v1535, %v1536
      %v1538 = vrot.slane %v1531, 4
      %v1539 = vsel %vm717, %v1536, %v1538
      %1540 = vrot.lane.b32.xlu0 %v1537, 125
      %v1541 = vpop.permute.xlu0 %1540
      %1542 = vrot.lane.b32.xlu0 %v1539, 125
      %v1543 = vpop.permute.xlu0 %1542
      %v1546 = vadd.f32 %v1524, %v1541
      %v1547 = vadd.f32 %v1525, %v1543
      %v1548 = vstv %s1527
      %v1549 = vmul.f32 %v1548, %v588
      %v1550 = vmul.f32 %v1548, %v589
      %v1551 = vmul.f32 %v1548, %v590
      %v1555 = vrot.slane %v1549, 4
      %v1556 = vrot.slane %v1550, 4
      %v1557 = vsel %vm717, %v1555, %v1556
      %v1558 = vrot.slane %v1551, 4
      %v1559 = vsel %vm717, %v1556, %v1558
      %1560 = vrot.lane.b32.xlu0 %v1557, 125
      %v1561 = vpop.permute.xlu0 %1560
      %1562 = vrot.lane.b32.xlu0 %v1559, 125
      %v1563 = vpop.permute.xlu0 %1562
      %v1566 = vadd.f32 %v1546, %v1561
      %v1567 = vadd.f32 %v1547, %v1563
      %s1568 = sld [smem:[#allocation6 + $0x26]]
      %s1569 = sld [smem:[#allocation6 + $0x57]]
      %v1570 = vstv %s1568
      %v1571 = vmul.f32 %v1570, %v585
      %v1572 = vmul.f32 %v1570, %v586
      %v1573 = vmul.f32 %v1570, %v587
      %v1577 = vrot.slane %v1571, 5
      %v1578 = vrot.slane %v1572, 5
      %v1579 = vsel %vm558, %v1577, %v1578
      %v1580 = vrot.slane %v1573, 5
      %v1581 = vsel %vm558, %v1578, %v1580
      %1582 = vrot.lane.b32.xlu0 %v1579, 125
      %v1583 = vpop.permute.xlu0 %1582
      %1584 = vrot.lane.b32.xlu0 %v1581, 125
      %v1585 = vpop.permute.xlu0 %1584
      %v1588 = vadd.f32 %v1566, %v1583
      %v1589 = vadd.f32 %v1567, %v1585
      %v1590 = vstv %s1569
      %v1591 = vmul.f32 %v1590, %v588
      %v1592 = vmul.f32 %v1590, %v589
      %v1593 = vmul.f32 %v1590, %v590
      %v1597 = vrot.slane %v1591, 5
      %v1598 = vrot.slane %v1592, 5
      %v1599 = vsel %vm558, %v1597, %v1598
      %v1600 = vrot.slane %v1593, 5
      %v1601 = vsel %vm558, %v1598, %v1600
      %1602 = vrot.lane.b32.xlu0 %v1599, 125
      %v1603 = vpop.permute.xlu0 %1602
      %1604 = vrot.lane.b32.xlu0 %v1601, 125
      %v1605 = vpop.permute.xlu0 %1604
      %v1608 = vadd.f32 %v1588, %v1603
      %v1609 = vadd.f32 %v1589, %v1605
      %s1610 = sld [smem:[#allocation6 + $0x2d]]
      %s1611 = sld [smem:[#allocation6 + $0x5e]]
      %v1612 = vstv %s1610
      %v1613 = vmul.f32 %v1612, %v585
      %v1614 = vmul.f32 %v1612, %v586
      %v1615 = vmul.f32 %v1612, %v587
      %v1619 = vrot.slane %v1613, 6
      %v1620 = vrot.slane %v1614, 6
      %v1621 = vsel %vm786, %v1619, %v1620
      %v1622 = vrot.slane %v1615, 6
      %v1623 = vsel %vm786, %v1620, %v1622
      %1624 = vrot.lane.b32.xlu0 %v1621, 125
      %v1625 = vpop.permute.xlu0 %1624
      %1626 = vrot.lane.b32.xlu0 %v1623, 125
      %v1627 = vpop.permute.xlu0 %1626
      %v1630 = vadd.f32 %v1608, %v1625
      %v1631 = vadd.f32 %v1609, %v1627
      %v1632 = vstv %s1611
      %v1633 = vmul.f32 %v1632, %v588
      %v1634 = vmul.f32 %v1632, %v589
      %v1635 = vmul.f32 %v1632, %v590
      %v1639 = vrot.slane %v1633, 6
      %v1640 = vrot.slane %v1634, 6
      %v1641 = vsel %vm786, %v1639, %v1640
      %v1642 = vrot.slane %v1635, 6
      %v1643 = vsel %vm786, %v1640, %v1642
      %1644 = vrot.lane.b32.xlu0 %v1641, 125
      %v1645 = vpop.permute.xlu0 %1644
      %1646 = vrot.lane.b32.xlu0 %v1643, 125
      %v1647 = vpop.permute.xlu0 %1646
      %v1650 = vadd.f32 %v1630, %v1645
      %v1651 = vadd.f32 %v1631, %v1647
      %s1652 = sld [smem:[#allocation6 + $0x4]]
      %s1653 = sld [smem:[#allocation6 + $0x35]]
      %v1654 = vstv %s1652
      %v1655 = vmul.f32 %v1654, %v585
      %v1656 = vmul.f32 %v1654, %v586
      %1659 = vrot.lane.b32.xlu0 %v1655, 124
      %v1660 = vpop.permute.xlu0 %1659
      %1661 = vrot.lane.b32.xlu0 %v1656, 124
      %v1662 = vpop.permute.xlu0 %1661
      %v1665 = vadd.f32 %v1650, %v1660
      %v1666 = vadd.f32 %v1651, %v1662
      %v1667 = vstv %s1653
      %v1668 = vmul.f32 %v1667, %v588
      %v1669 = vmul.f32 %v1667, %v589
      %1672 = vrot.lane.b32.xlu0 %v1668, 124
      %v1673 = vpop.permute.xlu0 %1672
      %1674 = vrot.lane.b32.xlu0 %v1669, 124
      %v1675 = vpop.permute.xlu0 %1674
      %v1678 = vadd.f32 %v1665, %v1673
      %v1679 = vadd.f32 %v1666, %v1675
      %s1680 = sld [smem:[#allocation6 + $0xb]]
      %s1681 = sld [smem:[#allocation6 + $0x3c]]
      %v1682 = vstv %s1680
      %v1683 = vmul.f32 %v1682, %v585
      %v1684 = vmul.f32 %v1682, %v586
      %v1685 = vmul.f32 %v1682, %v587
      %v1689 = vrot.slane %v1683, 1
      %v1690 = vrot.slane %v1684, 1
      %v1691 = vsel %vm612, %v1689, %v1690
      %v1692 = vrot.slane %v1685, 1
      %v1693 = vsel %vm612, %v1690, %v1692
      %1694 = vrot.lane.b32.xlu0 %v1691, 124
      %v1695 = vpop.permute.xlu0 %1694
      %1696 = vrot.lane.b32.xlu0 %v1693, 124
      %v1697 = vpop.permute.xlu0 %1696
      %v1700 = vadd.f32 %v1678, %v1695
      %v1701 = vadd.f32 %v1679, %v1697
      %v1702 = vstv %s1681
      %v1703 = vmul.f32 %v1702, %v588
      %v1704 = vmul.f32 %v1702, %v589
      %v1705 = vmul.f32 %v1702, %v590
      %v1709 = vrot.slane %v1703, 1
      %v1710 = vrot.slane %v1704, 1
      %v1711 = vsel %vm612, %v1709, %v1710
      %v1712 = vrot.slane %v1705, 1
      %v1713 = vsel %vm612, %v1710, %v1712
      %1714 = vrot.lane.b32.xlu0 %v1711, 124
      %v1715 = vpop.permute.xlu0 %1714
      %1716 = vrot.lane.b32.xlu0 %v1713, 124
      %v1717 = vpop.permute.xlu0 %1716
      %v1720 = vadd.f32 %v1700, %v1715
      %v1721 = vadd.f32 %v1701, %v1717
      %s1722 = sld [smem:[#allocation6 + $0x12]]
      %s1723 = sld [smem:[#allocation6 + $0x43]]
      %v1724 = vstv %s1722
      %v1725 = vmul.f32 %v1724, %v585
      %v1726 = vmul.f32 %v1724, %v586
      %v1727 = vmul.f32 %v1724, %v587
      %v1731 = vrot.slane %v1725, 2
      %v1732 = vrot.slane %v1726, 2
      %v1733 = vsel %vm647, %v1731, %v1732
      %v1734 = vrot.slane %v1727, 2
      %v1735 = vsel %vm647, %v1732, %v1734
      %1736 = vrot.lane.b32.xlu0 %v1733, 124
      %v1737 = vpop.permute.xlu0 %1736
      %1738 = vrot.lane.b32.xlu0 %v1735, 124
      %v1739 = vpop.permute.xlu0 %1738
      %v1742 = vadd.f32 %v1720, %v1737
      %v1743 = vadd.f32 %v1721, %v1739
      %v1744 = vstv %s1723
      %v1745 = vmul.f32 %v1744, %v588
      %v1746 = vmul.f32 %v1744, %v589
      %v1747 = vmul.f32 %v1744, %v590
      %v1751 = vrot.slane %v1745, 2
      %v1752 = vrot.slane %v1746, 2
      %v1753 = vsel %vm647, %v1751, %v1752
      %v1754 = vrot.slane %v1747, 2
      %v1755 = vsel %vm647, %v1752, %v1754
      %1756 = vrot.lane.b32.xlu0 %v1753, 124
      %v1757 = vpop.permute.xlu0 %1756
      %1758 = vrot.lane.b32.xlu0 %v1755, 124
      %v1759 = vpop.permute.xlu0 %1758
      %v1762 = vadd.f32 %v1742, %v1757
      %v1763 = vadd.f32 %v1743, %v1759
      %s1764 = sld [smem:[#allocation6 + $0x19]]
      %s1765 = sld [smem:[#allocation6 + $0x4a]]
      %v1766 = vstv %s1764
      %v1767 = vmul.f32 %v1766, %v585
      %v1768 = vmul.f32 %v1766, %v586
      %v1769 = vmul.f32 %v1766, %v587
      %v1773 = vrot.slane %v1767, 3
      %v1774 = vrot.slane %v1768, 3
      %v1775 = vsel %vm682, %v1773, %v1774
      %v1776 = vrot.slane %v1769, 3
      %v1777 = vsel %vm682, %v1774, %v1776
      %1778 = vrot.lane.b32.xlu0 %v1775, 124
      %v1779 = vpop.permute.xlu0 %1778
      %1780 = vrot.lane.b32.xlu0 %v1777, 124
      %v1781 = vpop.permute.xlu0 %1780
      %v1784 = vadd.f32 %v1762, %v1779
      %v1785 = vadd.f32 %v1763, %v1781
      %v1786 = vstv %s1765
      %v1787 = vmul.f32 %v1786, %v588
      %v1788 = vmul.f32 %v1786, %v589
      %v1789 = vmul.f32 %v1786, %v590
      %v1793 = vrot.slane %v1787, 3
      %v1794 = vrot.slane %v1788, 3
      %v1795 = vsel %vm682, %v1793, %v1794
      %v1796 = vrot.slane %v1789, 3
      %v1797 = vsel %vm682, %v1794, %v1796
      %1798 = vrot.lane.b32.xlu0 %v1795, 124
      %v1799 = vpop.permute.xlu0 %1798
      %1800 = vrot.lane.b32.xlu0 %v1797, 124
      %v1801 = vpop.permute.xlu0 %1800
      %v1804 = vadd.f32 %v1784, %v1799
      %v1805 = vadd.f32 %v1785, %v1801
      %s1806 = sld [smem:[#allocation6 + $0x20]]
      %s1807 = sld [smem:[#allocation6 + $0x51]]
      %v1808 = vstv %s1806
      %v1809 = vmul.f32 %v1808, %v585
      %v1810 = vmul.f32 %v1808, %v586
      %v1811 = vmul.f32 %v1808, %v587
      %v1815 = vrot.slane %v1809, 4
      %v1816 = vrot.slane %v1810, 4
      %v1817 = vsel %vm717, %v1815, %v1816
      %v1818 = vrot.slane %v1811, 4
      %v1819 = vsel %vm717, %v1816, %v1818
      %1820 = vrot.lane.b32.xlu0 %v1817, 124
      %v1821 = vpop.permute.xlu0 %1820
      %1822 = vrot.lane.b32.xlu0 %v1819, 124
      %v1823 = vpop.permute.xlu0 %1822
      %v1826 = vadd.f32 %v1804, %v1821
      %v1827 = vadd.f32 %v1805, %v1823
      %v1828 = vstv %s1807
      %v1829 = vmul.f32 %v1828, %v588
      %v1830 = vmul.f32 %v1828, %v589
      %v1831 = vmul.f32 %v1828, %v590
      %v1835 = vrot.slane %v1829, 4
      %v1836 = vrot.slane %v1830, 4
      %v1837 = vsel %vm717, %v1835, %v1836
      %v1838 = vrot.slane %v1831, 4
      %v1839 = vsel %vm717, %v1836, %v1838
      %1840 = vrot.lane.b32.xlu0 %v1837, 124
      %v1841 = vpop.permute.xlu0 %1840
      %1842 = vrot.lane.b32.xlu0 %v1839, 124
      %v1843 = vpop.permute.xlu0 %1842
      %v1846 = vadd.f32 %v1826, %v1841
      %v1847 = vadd.f32 %v1827, %v1843
      %s1848 = sld [smem:[#allocation6 + $0x27]]
      %s1849 = sld [smem:[#allocation6 + $0x58]]
      %v1850 = vstv %s1848
      %v1851 = vmul.f32 %v1850, %v585
      %v1852 = vmul.f32 %v1850, %v586
      %v1853 = vmul.f32 %v1850, %v587
      %v1857 = vrot.slane %v1851, 5
      %v1858 = vrot.slane %v1852, 5
      %v1859 = vsel %vm558, %v1857, %v1858
      %v1860 = vrot.slane %v1853, 5
      %v1861 = vsel %vm558, %v1858, %v1860
      %1862 = vrot.lane.b32.xlu0 %v1859, 124
      %v1863 = vpop.permute.xlu0 %1862
      %1864 = vrot.lane.b32.xlu0 %v1861, 124
      %v1865 = vpop.permute.xlu0 %1864
      %v1868 = vadd.f32 %v1846, %v1863
      %v1869 = vadd.f32 %v1847, %v1865
      %v1870 = vstv %s1849
      %v1871 = vmul.f32 %v1870, %v588
      %v1872 = vmul.f32 %v1870, %v589
      %v1873 = vmul.f32 %v1870, %v590
      %v1877 = vrot.slane %v1871, 5
      %v1878 = vrot.slane %v1872, 5
      %v1879 = vsel %vm558, %v1877, %v1878
      %v1880 = vrot.slane %v1873, 5
      %v1881 = vsel %vm558, %v1878, %v1880
      %1882 = vrot.lane.b32.xlu0 %v1879, 124
      %v1883 = vpop.permute.xlu0 %1882
      %1884 = vrot.lane.b32.xlu0 %v1881, 124
      %v1885 = vpop.permute.xlu0 %1884
      %v1888 = vadd.f32 %v1868, %v1883
      %v1889 = vadd.f32 %v1869, %v1885
      %s1890 = sld [smem:[#allocation6 + $0x2e]]
      %s1891 = sld [smem:[#allocation6 + $0x5f]]
      %v1892 = vstv %s1890
      %v1893 = vmul.f32 %v1892, %v585
      %v1894 = vmul.f32 %v1892, %v586
      %v1895 = vmul.f32 %v1892, %v587
      %v1899 = vrot.slane %v1893, 6
      %v1900 = vrot.slane %v1894, 6
      %v1901 = vsel %vm786, %v1899, %v1900
      %v1902 = vrot.slane %v1895, 6
      %v1903 = vsel %vm786, %v1900, %v1902
      %1904 = vrot.lane.b32.xlu0 %v1901, 124
      %v1905 = vpop.permute.xlu0 %1904
      %1906 = vrot.lane.b32.xlu0 %v1903, 124
      %v1907 = vpop.permute.xlu0 %1906
      %v1910 = vadd.f32 %v1888, %v1905
      %v1911 = vadd.f32 %v1889, %v1907
      %v1912 = vstv %s1891
      %v1913 = vmul.f32 %v1912, %v588
      %v1914 = vmul.f32 %v1912, %v589
      %v1915 = vmul.f32 %v1912, %v590
      %v1919 = vrot.slane %v1913, 6
      %v1920 = vrot.slane %v1914, 6
      %v1921 = vsel %vm786, %v1919, %v1920
      %v1922 = vrot.slane %v1915, 6
      %v1923 = vsel %vm786, %v1920, %v1922
      %1924 = vrot.lane.b32.xlu0 %v1921, 124
      %v1925 = vpop.permute.xlu0 %1924
      %1926 = vrot.lane.b32.xlu0 %v1923, 124
      %v1927 = vpop.permute.xlu0 %1926
      %v1930 = vadd.f32 %v1910, %v1925
      %v1931 = vadd.f32 %v1911, %v1927
      %s1932 = sld [smem:[#allocation6 + $0x5]]
      %s1933 = sld [smem:[#allocation6 + $0x36]]
      %v1934 = vstv %s1932
      %v1935 = vmul.f32 %v1934, %v585
      %v1936 = vmul.f32 %v1934, %v586
      %1939 = vrot.lane.b32.xlu0 %v1935, 123
      %v1940 = vpop.permute.xlu0 %1939
      %1941 = vrot.lane.b32.xlu0 %v1936, 123
      %v1942 = vpop.permute.xlu0 %1941
      %v1945 = vadd.f32 %v1930, %v1940
      %v1946 = vadd.f32 %v1931, %v1942
      %v1947 = vstv %s1933
      %v1948 = vmul.f32 %v1947, %v588
      %v1949 = vmul.f32 %v1947, %v589
      %1952 = vrot.lane.b32.xlu0 %v1948, 123
      %v1953 = vpop.permute.xlu0 %1952
      %1954 = vrot.lane.b32.xlu0 %v1949, 123
      %v1955 = vpop.permute.xlu0 %1954
      %v1958 = vadd.f32 %v1945, %v1953
      %v1959 = vadd.f32 %v1946, %v1955
      %s1960 = sld [smem:[#allocation6 + $0xc]]
      %s1961 = sld [smem:[#allocation6 + $0x3d]]
      %v1962 = vstv %s1960
      %v1963 = vmul.f32 %v1962, %v585
      %v1964 = vmul.f32 %v1962, %v586
      %v1965 = vmul.f32 %v1962, %v587
      %v1969 = vrot.slane %v1963, 1
      %v1970 = vrot.slane %v1964, 1
      %v1971 = vsel %vm612, %v1969, %v1970
      %v1972 = vrot.slane %v1965, 1
      %v1973 = vsel %vm612, %v1970, %v1972
      %1974 = vrot.lane.b32.xlu0 %v1971, 123
      %v1975 = vpop.permute.xlu0 %1974
      %1976 = vrot.lane.b32.xlu0 %v1973, 123
      %v1977 = vpop.permute.xlu0 %1976
      %v1980 = vadd.f32 %v1958, %v1975
      %v1981 = vadd.f32 %v1959, %v1977
      %v1982 = vstv %s1961
      %v1983 = vmul.f32 %v1982, %v588
      %v1984 = vmul.f32 %v1982, %v589
      %v1985 = vmul.f32 %v1982, %v590
      %v1989 = vrot.slane %v1983, 1
      %v1990 = vrot.slane %v1984, 1
      %v1991 = vsel %vm612, %v1989, %v1990
      %v1992 = vrot.slane %v1985, 1
      %v1993 = vsel %vm612, %v1990, %v1992
      %1994 = vrot.lane.b32.xlu0 %v1991, 123
      %v1995 = vpop.permute.xlu0 %1994
      %1996 = vrot.lane.b32.xlu0 %v1993, 123
      %v1997 = vpop.permute.xlu0 %1996
      %v2000 = vadd.f32 %v1980, %v1995
      %v2001 = vadd.f32 %v1981, %v1997
      %s2002 = sld [smem:[#allocation6 + $0x13]]
      %s2003 = sld [smem:[#allocation6 + $0x44]]
      %v2004 = vstv %s2002
      %v2005 = vmul.f32 %v2004, %v585
      %v2006 = vmul.f32 %v2004, %v586
      %v2007 = vmul.f32 %v2004, %v587
      %v2011 = vrot.slane %v2005, 2
      %v2012 = vrot.slane %v2006, 2
      %v2013 = vsel %vm647, %v2011, %v2012
      %v2014 = vrot.slane %v2007, 2
      %v2015 = vsel %vm647, %v2012, %v2014
      %2016 = vrot.lane.b32.xlu0 %v2013, 123
      %v2017 = vpop.permute.xlu0 %2016
      %2018 = vrot.lane.b32.xlu0 %v2015, 123
      %v2019 = vpop.permute.xlu0 %2018
      %v2022 = vadd.f32 %v2000, %v2017
      %v2023 = vadd.f32 %v2001, %v2019
      %v2024 = vstv %s2003
      %v2025 = vmul.f32 %v2024, %v588
      %v2026 = vmul.f32 %v2024, %v589
      %v2027 = vmul.f32 %v2024, %v590
      %v2031 = vrot.slane %v2025, 2
      %v2032 = vrot.slane %v2026, 2
      %v2033 = vsel %vm647, %v2031, %v2032
      %v2034 = vrot.slane %v2027, 2
      %v2035 = vsel %vm647, %v2032, %v2034
      %2036 = vrot.lane.b32.xlu0 %v2033, 123
      %v2037 = vpop.permute.xlu0 %2036
      %2038 = vrot.lane.b32.xlu0 %v2035, 123
      %v2039 = vpop.permute.xlu0 %2038
      %v2042 = vadd.f32 %v2022, %v2037
      %v2043 = vadd.f32 %v2023, %v2039
      %s2044 = sld [smem:[#allocation6 + $0x1a]]
      %s2045 = sld [smem:[#allocation6 + $0x4b]]
      %v2046 = vstv %s2044
      %v2047 = vmul.f32 %v2046, %v585
      %v2048 = vmul.f32 %v2046, %v586
      %v2049 = vmul.f32 %v2046, %v587
      %v2053 = vrot.slane %v2047, 3
      %v2054 = vrot.slane %v2048, 3
      %v2055 = vsel %vm682, %v2053, %v2054
      %v2056 = vrot.slane %v2049, 3
      %v2057 = vsel %vm682, %v2054, %v2056
      %2058 = vrot.lane.b32.xlu0 %v2055, 123
      %v2059 = vpop.permute.xlu0 %2058
      %2060 = vrot.lane.b32.xlu0 %v2057, 123
      %v2061 = vpop.permute.xlu0 %2060
      %v2064 = vadd.f32 %v2042, %v2059
      %v2065 = vadd.f32 %v2043, %v2061
      %v2066 = vstv %s2045
      %v2067 = vmul.f32 %v2066, %v588
      %v2068 = vmul.f32 %v2066, %v589
      %v2069 = vmul.f32 %v2066, %v590
      %v2073 = vrot.slane %v2067, 3
      %v2074 = vrot.slane %v2068, 3
      %v2075 = vsel %vm682, %v2073, %v2074
      %v2076 = vrot.slane %v2069, 3
      %v2077 = vsel %vm682, %v2074, %v2076
      %2078 = vrot.lane.b32.xlu0 %v2075, 123
      %v2079 = vpop.permute.xlu0 %2078
      %2080 = vrot.lane.b32.xlu0 %v2077, 123
      %v2081 = vpop.permute.xlu0 %2080
      %v2084 = vadd.f32 %v2064, %v2079
      %v2085 = vadd.f32 %v2065, %v2081
      %s2086 = sld [smem:[#allocation6 + $0x21]]
      %s2087 = sld [smem:[#allocation6 + $0x52]]
      %v2088 = vstv %s2086
      %v2089 = vmul.f32 %v2088, %v585
      %v2090 = vmul.f32 %v2088, %v586
      %v2091 = vmul.f32 %v2088, %v587
      %v2095 = vrot.slane %v2089, 4
      %v2096 = vrot.slane %v2090, 4
      %v2097 = vsel %vm717, %v2095, %v2096
      %v2098 = vrot.slane %v2091, 4
      %v2099 = vsel %vm717, %v2096, %v2098
      %2100 = vrot.lane.b32.xlu0 %v2097, 123
      %v2101 = vpop.permute.xlu0 %2100
      %2102 = vrot.lane.b32.xlu0 %v2099, 123
      %v2103 = vpop.permute.xlu0 %2102
      %v2106 = vadd.f32 %v2084, %v2101
      %v2107 = vadd.f32 %v2085, %v2103
      %v2108 = vstv %s2087
      %v2109 = vmul.f32 %v2108, %v588
      %v2110 = vmul.f32 %v2108, %v589
      %v2111 = vmul.f32 %v2108, %v590
      %v2115 = vrot.slane %v2109, 4
      %v2116 = vrot.slane %v2110, 4
      %v2117 = vsel %vm717, %v2115, %v2116
      %v2118 = vrot.slane %v2111, 4
      %v2119 = vsel %vm717, %v2116, %v2118
      %2120 = vrot.lane.b32.xlu0 %v2117, 123
      %v2121 = vpop.permute.xlu0 %2120
      %2122 = vrot.lane.b32.xlu0 %v2119, 123
      %v2123 = vpop.permute.xlu0 %2122
      %v2126 = vadd.f32 %v2106, %v2121
      %v2127 = vadd.f32 %v2107, %v2123
      %s2128 = sld [smem:[#allocation6 + $0x28]]
      %s2129 = sld [smem:[#allocation6 + $0x59]]
      %v2130 = vstv %s2128
      %v2131 = vmul.f32 %v2130, %v585
      %v2132 = vmul.f32 %v2130, %v586
      %v2133 = vmul.f32 %v2130, %v587
      %v2137 = vrot.slane %v2131, 5
      %v2138 = vrot.slane %v2132, 5
      %v2139 = vsel %vm558, %v2137, %v2138
      %v2140 = vrot.slane %v2133, 5
      %v2141 = vsel %vm558, %v2138, %v2140
      %2142 = vrot.lane.b32.xlu0 %v2139, 123
      %v2143 = vpop.permute.xlu0 %2142
      %2144 = vrot.lane.b32.xlu0 %v2141, 123
      %v2145 = vpop.permute.xlu0 %2144
      %v2148 = vadd.f32 %v2126, %v2143
      %v2149 = vadd.f32 %v2127, %v2145
      %v2150 = vstv %s2129
      %v2151 = vmul.f32 %v2150, %v588
      %v2152 = vmul.f32 %v2150, %v589
      %v2153 = vmul.f32 %v2150, %v590
      %v2157 = vrot.slane %v2151, 5
      %v2158 = vrot.slane %v2152, 5
      %v2159 = vsel %vm558, %v2157, %v2158
      %v2160 = vrot.slane %v2153, 5
      %v2161 = vsel %vm558, %v2158, %v2160
      %2162 = vrot.lane.b32.xlu0 %v2159, 123
      %v2163 = vpop.permute.xlu0 %2162
      %2164 = vrot.lane.b32.xlu0 %v2161, 123
      %v2165 = vpop.permute.xlu0 %2164
      %v2168 = vadd.f32 %v2148, %v2163
      %v2169 = vadd.f32 %v2149, %v2165
      %s2170 = sld [smem:[#allocation6 + $0x2f]]
      %s2171 = sld [smem:[#allocation6 + $0x60]]
      %v2172 = vstv %s2170
      %v2173 = vmul.f32 %v2172, %v585
      %v2174 = vmul.f32 %v2172, %v586
      %v2175 = vmul.f32 %v2172, %v587
      %v2179 = vrot.slane %v2173, 6
      %v2180 = vrot.slane %v2174, 6
      %v2181 = vsel %vm786, %v2179, %v2180
      %v2182 = vrot.slane %v2175, 6
      %v2183 = vsel %vm786, %v2180, %v2182
      %2184 = vrot.lane.b32.xlu0 %v2181, 123
      %v2185 = vpop.permute.xlu0 %2184
      %2186 = vrot.lane.b32.xlu0 %v2183, 123
      %v2187 = vpop.permute.xlu0 %2186
      %v2190 = vadd.f32 %v2168, %v2185
      %v2191 = vadd.f32 %v2169, %v2187
      %v2192 = vstv %s2171
      %v2193 = vmul.f32 %v2192, %v588
      %v2194 = vmul.f32 %v2192, %v589
      %v2195 = vmul.f32 %v2192, %v590
      %v2199 = vrot.slane %v2193, 6
      %v2200 = vrot.slane %v2194, 6
      %v2201 = vsel %vm786, %v2199, %v2200
      %v2202 = vrot.slane %v2195, 6
      %v2203 = vsel %vm786, %v2200, %v2202
      %2204 = vrot.lane.b32.xlu0 %v2201, 123
      %v2205 = vpop.permute.xlu0 %2204
      %2206 = vrot.lane.b32.xlu0 %v2203, 123
      %v2207 = vpop.permute.xlu0 %2206
      %v2210 = vadd.f32 %v2190, %v2205
      %v2211 = vadd.f32 %v2191, %v2207
      %s2212 = sld [smem:[#allocation6 + $0x6]]
      %s2213 = sld [smem:[#allocation6 + $0x37]]
      %v2214 = vstv %s2212
      %v2215 = vmul.f32 %v2214, %v585
      %v2216 = vmul.f32 %v2214, %v586
      %2219 = vrot.lane.b32.xlu0 %v2215, 122
      %v2220 = vpop.permute.xlu0 %2219
      %2221 = vrot.lane.b32.xlu0 %v2216, 122
      %v2222 = vpop.permute.xlu0 %2221
      %v2225 = vadd.f32 %v2210, %v2220
      %v2226 = vadd.f32 %v2211, %v2222
      %v2227 = vstv %s2213
      %v2228 = vmul.f32 %v2227, %v588
      %v2229 = vmul.f32 %v2227, %v589
      %2232 = vrot.lane.b32.xlu0 %v2228, 122
      %v2233 = vpop.permute.xlu0 %2232
      %2234 = vrot.lane.b32.xlu0 %v2229, 122
      %v2235 = vpop.permute.xlu0 %2234
      %v2238 = vadd.f32 %v2225, %v2233
      %v2239 = vadd.f32 %v2226, %v2235
      %s2240 = sld [smem:[#allocation6 + $0xd]]
      %s2241 = sld [smem:[#allocation6 + $0x3e]]
      %v2242 = vstv %s2240
      %v2243 = vmul.f32 %v2242, %v585
      %v2244 = vmul.f32 %v2242, %v586
      %v2245 = vmul.f32 %v2242, %v587
      %v2249 = vrot.slane %v2243, 1
      %v2250 = vrot.slane %v2244, 1
      %v2251 = vsel %vm612, %v2249, %v2250
      %v2252 = vrot.slane %v2245, 1
      %v2253 = vsel %vm612, %v2250, %v2252
      %2254 = vrot.lane.b32.xlu0 %v2251, 122
      %v2255 = vpop.permute.xlu0 %2254
      %2256 = vrot.lane.b32.xlu0 %v2253, 122
      %v2257 = vpop.permute.xlu0 %2256
      %v2260 = vadd.f32 %v2238, %v2255
      %v2261 = vadd.f32 %v2239, %v2257
      %v2262 = vstv %s2241
      %v2263 = vmul.f32 %v2262, %v588
      %v2264 = vmul.f32 %v2262, %v589
      %v2265 = vmul.f32 %v2262, %v590
      %v2269 = vrot.slane %v2263, 1
      %v2270 = vrot.slane %v2264, 1
      %v2271 = vsel %vm612, %v2269, %v2270
      %v2272 = vrot.slane %v2265, 1
      %v2273 = vsel %vm612, %v2270, %v2272
      %2274 = vrot.lane.b32.xlu0 %v2271, 122
      %v2275 = vpop.permute.xlu0 %2274
      %2276 = vrot.lane.b32.xlu0 %v2273, 122
      %v2277 = vpop.permute.xlu0 %2276
      %v2280 = vadd.f32 %v2260, %v2275
      %v2281 = vadd.f32 %v2261, %v2277
      %s2282 = sld [smem:[#allocation6 + $0x14]]
      %s2283 = sld [smem:[#allocation6 + $0x45]]
      %v2284 = vstv %s2282
      %v2285 = vmul.f32 %v2284, %v585
      %v2286 = vmul.f32 %v2284, %v586
      %v2287 = vmul.f32 %v2284, %v587
      %v2291 = vrot.slane %v2285, 2
      %v2292 = vrot.slane %v2286, 2
      %v2293 = vsel %vm647, %v2291, %v2292
      %v2294 = vrot.slane %v2287, 2
      %v2295 = vsel %vm647, %v2292, %v2294
      %2296 = vrot.lane.b32.xlu0 %v2293, 122
      %v2297 = vpop.permute.xlu0 %2296
      %2298 = vrot.lane.b32.xlu0 %v2295, 122
      %v2299 = vpop.permute.xlu0 %2298
      %v2302 = vadd.f32 %v2280, %v2297
      %v2303 = vadd.f32 %v2281, %v2299
      %v2304 = vstv %s2283
      %v2305 = vmul.f32 %v2304, %v588
      %v2306 = vmul.f32 %v2304, %v589
      %v2307 = vmul.f32 %v2304, %v590
      %v2311 = vrot.slane %v2305, 2
      %v2312 = vrot.slane %v2306, 2
      %v2313 = vsel %vm647, %v2311, %v2312
      %v2314 = vrot.slane %v2307, 2
      %v2315 = vsel %vm647, %v2312, %v2314
      %2316 = vrot.lane.b32.xlu0 %v2313, 122
      %v2317 = vpop.permute.xlu0 %2316
      %2318 = vrot.lane.b32.xlu0 %v2315, 122
      %v2319 = vpop.permute.xlu0 %2318
      %v2322 = vadd.f32 %v2302, %v2317
      %v2323 = vadd.f32 %v2303, %v2319
      %s2324 = sld [smem:[#allocation6 + $0x1b]]
      %s2325 = sld [smem:[#allocation6 + $0x4c]]
      %v2326 = vstv %s2324
      %v2327 = vmul.f32 %v2326, %v585
      %v2328 = vmul.f32 %v2326, %v586
      %v2329 = vmul.f32 %v2326, %v587
      %v2333 = vrot.slane %v2327, 3
      %v2334 = vrot.slane %v2328, 3
      %v2335 = vsel %vm682, %v2333, %v2334
      %v2336 = vrot.slane %v2329, 3
      %v2337 = vsel %vm682, %v2334, %v2336
      %2338 = vrot.lane.b32.xlu0 %v2335, 122
      %v2339 = vpop.permute.xlu0 %2338
      %2340 = vrot.lane.b32.xlu0 %v2337, 122
      %v2341 = vpop.permute.xlu0 %2340
      %v2344 = vadd.f32 %v2322, %v2339
      %v2345 = vadd.f32 %v2323, %v2341
      %v2346 = vstv %s2325
      %v2347 = vmul.f32 %v2346, %v588
      %v2348 = vmul.f32 %v2346, %v589
      %v2349 = vmul.f32 %v2346, %v590
      %v2353 = vrot.slane %v2347, 3
      %v2354 = vrot.slane %v2348, 3
      %v2355 = vsel %vm682, %v2353, %v2354
      %v2356 = vrot.slane %v2349, 3
      %v2357 = vsel %vm682, %v2354, %v2356
      %2358 = vrot.lane.b32.xlu0 %v2355, 122
      %v2359 = vpop.permute.xlu0 %2358
      %2360 = vrot.lane.b32.xlu0 %v2357, 122
      %v2361 = vpop.permute.xlu0 %2360
      %v2364 = vadd.f32 %v2344, %v2359
      %v2365 = vadd.f32 %v2345, %v2361
      %s2366 = sld [smem:[#allocation6 + $0x22]]
      %s2367 = sld [smem:[#allocation6 + $0x53]]
      %v2368 = vstv %s2366
      %v2369 = vmul.f32 %v2368, %v585
      %v2370 = vmul.f32 %v2368, %v586
      %v2371 = vmul.f32 %v2368, %v587
      %v2375 = vrot.slane %v2369, 4
      %v2376 = vrot.slane %v2370, 4
      %v2377 = vsel %vm717, %v2375, %v2376
      %v2378 = vrot.slane %v2371, 4
      %v2379 = vsel %vm717, %v2376, %v2378
      %2380 = vrot.lane.b32.xlu0 %v2377, 122
      %v2381 = vpop.permute.xlu0 %2380
      %2382 = vrot.lane.b32.xlu0 %v2379, 122
      %v2383 = vpop.permute.xlu0 %2382
      %v2386 = vadd.f32 %v2364, %v2381
      %v2387 = vadd.f32 %v2365, %v2383
      %v2388 = vstv %s2367
      %v2389 = vmul.f32 %v2388, %v588
      %v2390 = vmul.f32 %v2388, %v589
      %v2391 = vmul.f32 %v2388, %v590
      %v2395 = vrot.slane %v2389, 4
      %v2396 = vrot.slane %v2390, 4
      %v2397 = vsel %vm717, %v2395, %v2396
      %v2398 = vrot.slane %v2391, 4
      %v2399 = vsel %vm717, %v2396, %v2398
      %2400 = vrot.lane.b32.xlu0 %v2397, 122
      %v2401 = vpop.permute.xlu0 %2400
      %2402 = vrot.lane.b32.xlu0 %v2399, 122
      %v2403 = vpop.permute.xlu0 %2402
      %v2406 = vadd.f32 %v2386, %v2401
      %v2407 = vadd.f32 %v2387, %v2403
      %s2408 = sld [smem:[#allocation6 + $0x29]]
      %s2409 = sld [smem:[#allocation6 + $0x5a]]
      %v2410 = vstv %s2408
      %v2411 = vmul.f32 %v2410, %v585
      %v2412 = vmul.f32 %v2410, %v586
      %v2413 = vmul.f32 %v2410, %v587
      %v2417 = vrot.slane %v2411, 5
      %v2418 = vrot.slane %v2412, 5
      %v2419 = vsel %vm558, %v2417, %v2418
      %v2420 = vrot.slane %v2413, 5
      %v2421 = vsel %vm558, %v2418, %v2420
      %2422 = vrot.lane.b32.xlu0 %v2419, 122
      %v2423 = vpop.permute.xlu0 %2422
      %2424 = vrot.lane.b32.xlu0 %v2421, 122
      %v2425 = vpop.permute.xlu0 %2424
      %v2428 = vadd.f32 %v2406, %v2423
      %v2429 = vadd.f32 %v2407, %v2425
      %v2430 = vstv %s2409
      %v2431 = vmul.f32 %v2430, %v588
      %v2432 = vmul.f32 %v2430, %v589
      %v2433 = vmul.f32 %v2430, %v590
      %v2437 = vrot.slane %v2431, 5
      %v2438 = vrot.slane %v2432, 5
      %v2439 = vsel %vm558, %v2437, %v2438
      %v2440 = vrot.slane %v2433, 5
      %v2441 = vsel %vm558, %v2438, %v2440
      %2442 = vrot.lane.b32.xlu0 %v2439, 122
      %v2443 = vpop.permute.xlu0 %2442
      %2444 = vrot.lane.b32.xlu0 %v2441, 122
      %v2445 = vpop.permute.xlu0 %2444
      %v2448 = vadd.f32 %v2428, %v2443
      %v2449 = vadd.f32 %v2429, %v2445
      %s2450 = sld [smem:[#allocation6 + $0x30]]
      %s2451 = sld [smem:[#allocation6 + $0x61]]
      %v2452 = vstv %s2450
      %v2453 = vmul.f32 %v2452, %v585
      %v2454 = vmul.f32 %v2452, %v586
      %v2455 = vmul.f32 %v2452, %v587
      %v2459 = vrot.slane %v2453, 6
      %v2460 = vrot.slane %v2454, 6
      %v2461 = vsel %vm786, %v2459, %v2460
      %v2462 = vrot.slane %v2455, 6
      %v2463 = vsel %vm786, %v2460, %v2462
      %2464 = vrot.lane.b32.xlu0 %v2461, 122
      %v2465 = vpop.permute.xlu0 %2464
      %2466 = vrot.lane.b32.xlu0 %v2463, 122
      %v2467 = vpop.permute.xlu0 %2466
      %v2470 = vadd.f32 %v2448, %v2465
      %v2471 = vadd.f32 %v2449, %v2467
      %v2472 = vstv %s2451
      %v2473 = vmul.f32 %v2472, %v588
      %v2474 = vmul.f32 %v2472, %v589
      %v2475 = vmul.f32 %v2472, %v590
      %v2479 = vrot.slane %v2473, 6
      %v2480 = vrot.slane %v2474, 6
      %v2481 = vsel %vm786, %v2479, %v2480
      %v2482 = vrot.slane %v2475, 6
      %v2483 = vsel %vm786, %v2480, %v2482
      %2484 = vrot.lane.b32.xlu0 %v2481, 122
      %v2485 = vpop.permute.xlu0 %2484
      %2486 = vrot.lane.b32.xlu0 %v2483, 122
      %v2487 = vpop.permute.xlu0 %2486
      %v2490 = vadd.f32 %v2470, %v2485
      %v2491 = vadd.f32 %v2471, %v2487
      %2494 = vrot.lane.b32.xlu0 %v2490, 122
      %v2495 = vpop.permute.xlu0 %2494
      %2496 = vrot.lane.b32.xlu0 %v2491, 122
      %v2497 = vpop.permute.xlu0 %2496
      %vm2500 = vcmask 130048
      %v2501 = vsel %vm2500, %v2490, %v2495
      %v2502 = vsel %vm2500, %v2491, %v2497
      %v2503 = vxor.u32 %v2501, 2147483648
      %v2504 = vxor.u32 %v2502, 2147483648
      %v2505 = vmul.f32 %v2503, 1.442695
      %v2506 = vpow.pop %v2505
      %v2507 = vmul.f32 %v2504, 1.442695
      %v2508 = vpow.pop %v2507
      %v2509 = vadd.f32 %v2506, 1.0
      %v2510 = vadd.f32 %v2508, 1.0
      %v2511 = vrcp.pop %v2509
      %v2512 = vmul.f32 1.0, %v2511
      %v2513 = vrcp.pop %v2510
      %v2514 = vmul.f32 1.0, %v2513
      %vm2515 = vcmask 261120
      %2516 = vst.msk [vmem:[#allocation11] sm:$0xff] %vm2515, %v2512
      %2517 = vst.msk [vmem:[#allocation11 + $0x8] sm:$0xff] %vm2515, %v2514
    $region25: #{tpu_custom_call.1} parent=1 // pred_fallthru
      _
    // Predicated region
    $region26: #{tpu_custom_call.1} parent=1 // pred_check
      _
    $region27: #{tpu_custom_call.1} parent=1 // pred_check_branch
      %2519 = sbr.rel (0) target = $region29
    $region28: #{tpu_custom_call.1} parent=1 // pred_region
      %s2521 = ssub.s32 256, 256
      %2522 = vsyncadd [#allocation8], %s2521
      %s2523 = sshll.u32 [#allocation11], 4
      %s2524 = int_to_ptr.vmem [resolvable:$true] %s2523
      %2529 = dma.vmem_to_hbm [thread:$0]  %s2524, 256, %s2, [#allocation8], 128, 128, 8
    $region29: #{tpu_custom_call.1} parent=1 // pred_fallthru
      _
    // Predicated region
    $region30: #{tpu_custom_call.1} parent=1 // pred_check
      _
    $region31: #{tpu_custom_call.1} parent=1 // pred_check_branch
      %2531 = sbr.rel (0) target = $region33
    $region32: #{tpu_custom_call.1} parent=1 // pred_region
      %2532 = dma.done [#allocation8], 256
    $region33: #{tpu_custom_call.1} parent=1 // pred_fallthru
      _
    %2533 = vsyncpa [#allocation7], 1
    %2534 = vsyncpa [#allocation8], 1
    %2535 = vsyncpa [#allocation9], 1

</llo_original>
